<compile_context>
chip_gen: v7x
topology: tpu7x:2x2x1
jax: 0.10.0
libtpu: 0.0.40
codegen_flags: <defaults>
</compile_context>

<pallas_src>
import functools

import jax
import jax.numpy as jnp
from jax.experimental import pallas as pl
from jax.experimental.pallas import tpu as pltpu


def _lstm_encoder_kernel(tok_ref, embp_ref, wih_ref, whh_ref, b_ref,
                         h0_ref, c0_ref,
                         out_ref, hn_ref, cn_ref):
    """Single invocation: runs all n_layers (unrolled) for one time step."""
    del tok_ref  # token id only used by the embedding-projection index_map
    L = h0_ref.shape[0]
    H = h0_ref.shape[-1]

    x = None
    for l in range(L):                                   # static unrolled layer loop
        h_prev = h0_ref[l].astype(jnp.float32)           # (1, H)
        c_prev = c0_ref[l].astype(jnp.float32)           # (1, H)

        if l == 0:
            # Fused embedding lookup + layer-0 input projection (precomputed, f32).
            in_gates = embp_ref[0].astype(jnp.float32)   # (1, 4H)
        else:
            in_gates = jnp.dot(x.astype(jnp.bfloat16), wih_ref[l - 1],
                               preferred_element_type=jnp.float32)

        gates = (in_gates
                 + jnp.dot(h_prev.astype(jnp.bfloat16), whh_ref[l],
                           preferred_element_type=jnp.float32)
                 + b_ref[l].astype(jnp.float32))         # (1, 4H)

        i_g = jax.nn.sigmoid(gates[:, 0 * H:1 * H])
        f_g = jax.nn.sigmoid(gates[:, 1 * H:2 * H])
        g_g = jnp.tanh(gates[:, 2 * H:3 * H])
        o_g = jax.nn.sigmoid(gates[:, 3 * H:4 * H])

        c_new = f_g * c_prev + i_g * g_g
        h_new = o_g * jnp.tanh(c_new)

        hn_ref[l] = h_new.astype(hn_ref.dtype)
        cn_ref[l] = c_new.astype(cn_ref.dtype)
        x = h_new                                        # feed next layer

    out_ref[0] = x.astype(out_ref.dtype)                 # top-layer hidden state


def pack_params(emb_table, w_ih, w_hh, b_ih, b_hh):
    """One-time (init-time) weight packing.  NOT on the per-call path.

    Returns:
      emb_proj: (V, 1, 4H) f32  -- fused embedding @ W_ih[0].T projection table
      wih:      (max(L-1,1), H, 4H) bf16 -- transposed input weights, layers 1..L-1
      whh:      (L, H, 4H) bf16 -- transposed hidden weights
      b:        (L, 1, 4H) f32  -- b_ih + b_hh
    """
    L = len(w_ih)
    H = w_hh[0].shape[1]
    emb_proj = (emb_table.astype(jnp.float32) @ w_ih[0].T.astype(jnp.float32))
    emb_proj = emb_proj[:, None, :]                                         # (V, 1, 4H)
    if L > 1:
        wih = jnp.stack([w.T for w in w_ih[1:]]).astype(jnp.bfloat16)       # (L-1, H, 4H)
    else:
        wih = jnp.zeros((1, H, 4 * H), jnp.bfloat16)                        # unused
    whh = jnp.stack([w.T for w in w_hh]).astype(jnp.bfloat16)               # (L, H, 4H)
    b = jnp.stack([(bi + bh)[None, :] for bi, bh in zip(b_ih, b_hh)])
    b = b.astype(jnp.float32)                                               # (L, 1, 4H)
    return emb_proj, wih, whh, b


@functools.partial(jax.jit, static_argnames=())
def lstm_pro_encoder_forward(tok, emb_proj, wih, whh, b, h0, c0):
    """tok: int32 (1,);  packed params from pack_params();  h0, c0: (L, 1, H).
       Returns (output (1,1,H), (h_n (L,1,H), c_n (L,1,H)))."""
    L, _, H = h0.shape
    Lm1 = wih.shape[0]

    grid_spec = pltpu.PrefetchScalarGridSpec(
        num_scalar_prefetch=1,
        grid=(1,),
        in_specs=[
            pl.BlockSpec((1, 1, 4 * H), lambda i, tok: (tok[0], 0, 0)),  # emb-proj row
            pl.BlockSpec((Lm1, H, 4 * H), lambda i, tok: (0, 0, 0)),     # W_ih (1..L-1)
            pl.BlockSpec((L, H, 4 * H), lambda i, tok: (0, 0, 0)),       # W_hh
            pl.BlockSpec((L, 1, 4 * H), lambda i, tok: (0, 0, 0)),       # bias
            pl.BlockSpec((L, 1, H), lambda i, tok: (0, 0, 0)),           # h0
            pl.BlockSpec((L, 1, H), lambda i, tok: (0, 0, 0)),           # c0
        ],
        out_specs=[
            pl.BlockSpec((1, 1, H), lambda i, tok: (0, 0, 0)),           # output
            pl.BlockSpec((L, 1, H), lambda i, tok: (0, 0, 0)),           # h_n
            pl.BlockSpec((L, 1, H), lambda i, tok: (0, 0, 0)),           # c_n
        ],
    )

    out, h_n, c_n = pl.pallas_call(
        _lstm_encoder_kernel,
        out_shape=(
            jax.ShapeDtypeStruct((1, 1, H), jnp.float32),
            jax.ShapeDtypeStruct((L, 1, H), jnp.float32),
            jax.ShapeDtypeStruct((L, 1, H), jnp.float32),
        ),
        grid_spec=grid_spec,
        compiler_params=pltpu.CompilerParams(dimension_semantics=("arbitrary",)),
    )(tok, emb_proj, wih, whh, b, h0, c0)
    return out, (h_n, c_n)


def _reference_forward(tok, emb_table, w_ih, w_hh, b_ih, b_hh, h0, c0):
    """Pure-JAX f32 reference (PyTorch nn.LSTM single-step semantics)."""
    x = emb_table[tok[0]][None, :]                    # (1, E)
    hs, cs = [], []
    for l in range(len(w_ih)):
        H = w_hh[l].shape[1]
        g = x @ w_ih[l].T + b_ih[l] + h0[l] @ w_hh[l].T + b_hh[l]
        i = jax.nn.sigmoid(g[:, 0 * H:1 * H])
        f = jax.nn.sigmoid(g[:, 1 * H:2 * H])
        gg = jnp.tanh(g[:, 2 * H:3 * H])
        o = jax.nn.sigmoid(g[:, 3 * H:4 * H])
        c = f * c0[l] + i * gg
        h = o * jnp.tanh(c)
        hs.append(h)
        cs.append(c)
        x = h
    return x[None], jnp.stack(hs), jnp.stack(cs)


if __name__ == "__main__":
    # Small, TPU-friendly config consistent with the module's constructor.
    V, E, H, L = 16, 256, 128, 3                      # input_size, embedding, hidden, n_layers

    key = jax.random.PRNGKey(0)
    keys = jax.random.split(key, 4 * L + 4)
    k_scale = 1.0 / jnp.sqrt(H)

    emb_table = jax.random.normal(keys[0], (V, E), jnp.float32)
    w_ih, w_hh, b_ih, b_hh = [], [], [], []
    for l in range(L):
        in_l = E if l == 0 else H
        w_ih.append(jax.random.uniform(keys[1 + 4 * l], (4 * H, in_l), jnp.float32,
                                       -k_scale, k_scale))
        w_hh.append(jax.random.uniform(keys[2 + 4 * l], (4 * H, H), jnp.float32,
                                       -k_scale, k_scale))
        b_ih.append(jax.random.uniform(keys[3 + 4 * l], (4 * H,), jnp.float32,
                                       -k_scale, k_scale))
        b_hh.append(jax.random.uniform(keys[4 + 4 * l], (4 * H,), jnp.float32,
                                       -k_scale, k_scale))

    tok = jnp.array([5], dtype=jnp.int32)
    h0 = 0.1 * jax.random.normal(keys[-2], (L, 1, H), jnp.float32)
    c0 = 0.1 * jax.random.normal(keys[-1], (L, 1, H), jnp.float32)

    # One-time packing (init-time), then the hot path only runs the kernel.
    emb_proj, wih_p, whh_p, b_p = pack_params(emb_table, w_ih, w_hh, b_ih, b_hh)
    jax.block_until_ready((emb_proj, wih_p, whh_p, b_p))

    out, (h_n, c_n) = lstm_pro_encoder_forward(tok, emb_proj, wih_p, whh_p, b_p, h0, c0)
    jax.block_until_ready((out, h_n, c_n))

    ref_out, ref_h, ref_c = _reference_forward(tok, emb_table, w_ih, w_hh,
                                               b_ih, b_hh, h0, c0)
    assert out.shape == (1, 1, H) and h_n.shape == (L, 1, H) and c_n.shape == (L, 1, H)
    # Weights are stored/streamed in bf16 (f32 accumulation), so compare with a
    # correspondingly relaxed tolerance against the pure-f32 reference.
    assert jnp.allclose(out, ref_out, atol=2e-2), "output mismatch"
    assert jnp.allclose(h_n, ref_h, atol=2e-2), "h_n mismatch"
    assert jnp.allclose(c_n, ref_c, atol=2e-2), "c_n mismatch"
    print("KERNEL_OK")
</pallas_src>

<mosaic_0001>
module attributes {stable_mosaic.version = 11 : i64} {
  func.func @_lstm_encoder_kernel(%arg0: i32, %arg1: memref<1xi32, #tpu.memory_space<smem>>, %arg2: memref<1x1x512xf32, #tpu.memory_space<vmem>>, %arg3: memref<2x128x512xbf16, #tpu.memory_space<vmem>>, %arg4: memref<3x128x512xbf16, #tpu.memory_space<vmem>>, %arg5: memref<3x1x512xf32, #tpu.memory_space<vmem>>, %arg6: memref<3x1x128xf32, #tpu.memory_space<vmem>>, %arg7: memref<3x1x128xf32, #tpu.memory_space<vmem>>, %arg8: memref<1x1x128xf32, #tpu.memory_space<vmem>>, %arg9: memref<3x1x128xf32, #tpu.memory_space<vmem>>, %arg10: memref<3x1x128xf32, #tpu.memory_space<vmem>>) attributes {dimension_semantics = [#tpu.dimension_semantics<arbitrary>], iteration_bounds = array<i64: 1>, scalar_prefetch = 1 : i64, scratch_operands = 0 : i64, tpu.core_type = #tpu.core_type<tc>, window_params = [{transform_indices = @transform_0, window_bounds = array<i64: 1, 1, 512>}, {pipeline_mode = #tpu.pipeline_mode<synchronous>, transform_indices = @transform_1, window_bounds = array<i64: 2, 128, 512>}, {pipeline_mode = #tpu.pipeline_mode<synchronous>, transform_indices = @transform_2, window_bounds = array<i64: 3, 128, 512>}, {pipeline_mode = #tpu.pipeline_mode<synchronous>, transform_indices = @transform_3, window_bounds = array<i64: 3, 1, 512>}, {pipeline_mode = #tpu.pipeline_mode<synchronous>, transform_indices = @transform_4, window_bounds = array<i64: 3, 1, 128>}, {pipeline_mode = #tpu.pipeline_mode<synchronous>, transform_indices = @transform_5, window_bounds = array<i64: 3, 1, 128>}, {pipeline_mode = #tpu.pipeline_mode<synchronous>, transform_indices = @transform_6, window_bounds = array<i64: 1, 1, 128>}, {pipeline_mode = #tpu.pipeline_mode<synchronous>, transform_indices = @transform_7, window_bounds = array<i64: 3, 1, 128>}, {pipeline_mode = #tpu.pipeline_mode<synchronous>, transform_indices = @transform_8, window_bounds = array<i64: 3, 1, 128>}]} {
    %c0 = arith.constant 0 : index
    %c0_0 = arith.constant 0 : index
    %c0_1 = arith.constant 0 : index
    %0 = vector.load %arg6[%c0, %c0_0, %c0_1] : memref<3x1x128xf32, #tpu.memory_space<vmem>>, vector<1x1x128xf32>
    %1 = vector.shape_cast %0 : vector<1x1x128xf32> to vector<1x128xf32>
    %c0_2 = arith.constant 0 : index
    %c0_3 = arith.constant 0 : index
    %c0_4 = arith.constant 0 : index
    %2 = vector.load %arg7[%c0_2, %c0_3, %c0_4] : memref<3x1x128xf32, #tpu.memory_space<vmem>>, vector<1x1x128xf32>
    %3 = vector.shape_cast %2 : vector<1x1x128xf32> to vector<1x128xf32>
    %c0_5 = arith.constant 0 : index
    %c0_6 = arith.constant 0 : index
    %c0_7 = arith.constant 0 : index
    %4 = vector.load %arg2[%c0_5, %c0_6, %c0_7] : memref<1x1x512xf32, #tpu.memory_space<vmem>>, vector<1x1x512xf32>
    %5 = vector.shape_cast %4 : vector<1x1x512xf32> to vector<1x512xf32>
    %6 = arith.truncf %1 : vector<1x128xf32> to vector<1x128xbf16>
    %c0_8 = arith.constant 0 : index
    %c0_9 = arith.constant 0 : index
    %c0_10 = arith.constant 0 : index
    %7 = vector.load %arg4[%c0_8, %c0_9, %c0_10] : memref<3x128x512xbf16, #tpu.memory_space<vmem>>, vector<1x128x512xbf16>
    %8 = vector.shape_cast %7 : vector<1x128x512xbf16> to vector<128x512xbf16>
    %cst = arith.constant dense<0.000000e+00> : vector<1x512xf32>
    %9 = tpu.matmul %6, %8, %cst {dimension_numbers = #tpu.dot_dimension_numbers<[1], [0], [0], [1], [0, 0, 1, 1], [], []>} : vector<1x128xbf16>, vector<128x512xbf16>, vector<1x512xf32> -> vector<1x512xf32>
    %10 = arith.addf %5, %9 : vector<1x512xf32>
    %c0_11 = arith.constant 0 : index
    %c0_12 = arith.constant 0 : index
    %c0_13 = arith.constant 0 : index
    %11 = vector.load %arg5[%c0_11, %c0_12, %c0_13] : memref<3x1x512xf32, #tpu.memory_space<vmem>>, vector<1x1x512xf32>
    %12 = vector.shape_cast %11 : vector<1x1x512xf32> to vector<1x512xf32>
    %13 = arith.addf %10, %12 : vector<1x512xf32>
    %14 = vector.extract_strided_slice %13 {offsets = [0, 0], sizes = [1, 128], strides = [1, 1]} : vector<1x512xf32> to vector<1x128xf32>
    %15 = arith.negf %14 : vector<1x128xf32>
    %16 = math.exp %15 : vector<1x128xf32>
    %cst_14 = arith.constant 1.000000e+00 : f32
    %17 = vector.broadcast %cst_14 : f32 to vector<1x128xf32>
    %18 = arith.addf %17, %16 : vector<1x128xf32>
    %19 = arith.divf %17, %18 : vector<1x128xf32>
    %20 = vector.extract_strided_slice %13 {offsets = [0, 128], sizes = [1, 128], strides = [1, 1]} : vector<1x512xf32> to vector<1x128xf32>
    %21 = arith.negf %20 : vector<1x128xf32>
    %22 = math.exp %21 : vector<1x128xf32>
    %cst_15 = arith.constant 1.000000e+00 : f32
    %23 = vector.broadcast %cst_15 : f32 to vector<1x128xf32>
    %24 = arith.addf %23, %22 : vector<1x128xf32>
    %25 = arith.divf %23, %24 : vector<1x128xf32>
    %26 = vector.extract_strided_slice %13 {offsets = [0, 256], sizes = [1, 128], strides = [1, 1]} : vector<1x512xf32> to vector<1x128xf32>
    %27 = math.tanh %26 : vector<1x128xf32>
    %28 = vector.extract_strided_slice %13 {offsets = [0, 384], sizes = [1, 128], strides = [1, 1]} : vector<1x512xf32> to vector<1x128xf32>
    %29 = arith.negf %28 : vector<1x128xf32>
    %30 = math.exp %29 : vector<1x128xf32>
    %cst_16 = arith.constant 1.000000e+00 : f32
    %31 = vector.broadcast %cst_16 : f32 to vector<1x128xf32>
    %32 = arith.addf %31, %30 : vector<1x128xf32>
    %33 = arith.divf %31, %32 : vector<1x128xf32>
    %34 = arith.mulf %25, %3 : vector<1x128xf32>
    %35 = arith.mulf %19, %27 : vector<1x128xf32>
    %36 = arith.addf %34, %35 : vector<1x128xf32>
    %37 = math.tanh %36 : vector<1x128xf32>
    %38 = arith.mulf %33, %37 : vector<1x128xf32>
    %c0_17 = arith.constant 0 : index
    %c0_18 = arith.constant 0 : index
    %c0_19 = arith.constant 0 : index
    %39 = vector.load %arg9[%c0_17, %c0_18, %c0_19] : memref<3x1x128xf32, #tpu.memory_space<vmem>>, vector<1x1x128xf32>
    %40 = vector.shape_cast %39 : vector<1x1x128xf32> to vector<1x128xf32>
    %41 = vector.shape_cast %38 : vector<1x128xf32> to vector<1x1x128xf32>
    tpu.vector_store %arg9[%c0_17, %c0_18, %c0_19], %41 {strides = array<i32>} : memref<3x1x128xf32, #tpu.memory_space<vmem>>, vector<1x1x128xf32>,
    %c0_20 = arith.constant 0 : index
    %c0_21 = arith.constant 0 : index
    %c0_22 = arith.constant 0 : index
    %42 = vector.load %arg10[%c0_20, %c0_21, %c0_22] : memref<3x1x128xf32, #tpu.memory_space<vmem>>, vector<1x1x128xf32>
    %43 = vector.shape_cast %42 : vector<1x1x128xf32> to vector<1x128xf32>
    %44 = vector.shape_cast %36 : vector<1x128xf32> to vector<1x1x128xf32>
    tpu.vector_store %arg10[%c0_20, %c0_21, %c0_22], %44 {strides = array<i32>} : memref<3x1x128xf32, #tpu.memory_space<vmem>>, vector<1x1x128xf32>,
    %c1 = arith.constant 1 : index
    %c0_23 = arith.constant 0 : index
    %c0_24 = arith.constant 0 : index
    %45 = vector.load %arg6[%c1, %c0_23, %c0_24] : memref<3x1x128xf32, #tpu.memory_space<vmem>>, vector<1x1x128xf32>
    %46 = vector.shape_cast %45 : vector<1x1x128xf32> to vector<1x128xf32>
    %c1_25 = arith.constant 1 : index
    %c0_26 = arith.constant 0 : index
    %c0_27 = arith.constant 0 : index
    %47 = vector.load %arg7[%c1_25, %c0_26, %c0_27] : memref<3x1x128xf32, #tpu.memory_space<vmem>>, vector<1x1x128xf32>
    %48 = vector.shape_cast %47 : vector<1x1x128xf32> to vector<1x128xf32>
    %49 = arith.truncf %38 : vector<1x128xf32> to vector<1x128xbf16>
    %c0_28 = arith.constant 0 : index
    %c0_29 = arith.constant 0 : index
    %c0_30 = arith.constant 0 : index
    %50 = vector.load %arg3[%c0_28, %c0_29, %c0_30] : memref<2x128x512xbf16, #tpu.memory_space<vmem>>, vector<1x128x512xbf16>
    %51 = vector.shape_cast %50 : vector<1x128x512xbf16> to vector<128x512xbf16>
    %cst_31 = arith.constant dense<0.000000e+00> : vector<1x512xf32>
    %52 = tpu.matmul %49, %51, %cst_31 {dimension_numbers = #tpu.dot_dimension_numbers<[1], [0], [0], [1], [0, 0, 1, 1], [], []>} : vector<1x128xbf16>, vector<128x512xbf16>, vector<1x512xf32> -> vector<1x512xf32>
    %53 = arith.truncf %46 : vector<1x128xf32> to vector<1x128xbf16>
    %c1_32 = arith.constant 1 : index
    %c0_33 = arith.constant 0 : index
    %c0_34 = arith.constant 0 : index
    %54 = vector.load %arg4[%c1_32, %c0_33, %c0_34] : memref<3x128x512xbf16, #tpu.memory_space<vmem>>, vector<1x128x512xbf16>
    %55 = vector.shape_cast %54 : vector<1x128x512xbf16> to vector<128x512xbf16>
    %cst_35 = arith.constant dense<0.000000e+00> : vector<1x512xf32>
    %56 = tpu.matmul %53, %55, %cst_35 {dimension_numbers = #tpu.dot_dimension_numbers<[1], [0], [0], [1], [0, 0, 1, 1], [], []>} : vector<1x128xbf16>, vector<128x512xbf16>, vector<1x512xf32> -> vector<1x512xf32>
    %57 = arith.addf %52, %56 : vector<1x512xf32>
    %c1_36 = arith.constant 1 : index
    %c0_37 = arith.constant 0 : index
    %c0_38 = arith.constant 0 : index
    %58 = vector.load %arg5[%c1_36, %c0_37, %c0_38] : memref<3x1x512xf32, #tpu.memory_space<vmem>>, vector<1x1x512xf32>
    %59 = vector.shape_cast %58 : vector<1x1x512xf32> to vector<1x512xf32>
    %60 = arith.addf %57, %59 : vector<1x512xf32>
    %61 = vector.extract_strided_slice %60 {offsets = [0, 0], sizes = [1, 128], strides = [1, 1]} : vector<1x512xf32> to vector<1x128xf32>
    %62 = arith.negf %61 : vector<1x128xf32>
    %63 = math.exp %62 : vector<1x128xf32>
    %cst_39 = arith.constant 1.000000e+00 : f32
    %64 = vector.broadcast %cst_39 : f32 to vector<1x128xf32>
    %65 = arith.addf %64, %63 : vector<1x128xf32>
    %66 = arith.divf %64, %65 : vector<1x128xf32>
    %67 = vector.extract_strided_slice %60 {offsets = [0, 128], sizes = [1, 128], strides = [1, 1]} : vector<1x512xf32> to vector<1x128xf32>
    %68 = arith.negf %67 : vector<1x128xf32>
    %69 = math.exp %68 : vector<1x128xf32>
    %cst_40 = arith.constant 1.000000e+00 : f32
    %70 = vector.broadcast %cst_40 : f32 to vector<1x128xf32>
    %71 = arith.addf %70, %69 : vector<1x128xf32>
    %72 = arith.divf %70, %71 : vector<1x128xf32>
    %73 = vector.extract_strided_slice %60 {offsets = [0, 256], sizes = [1, 128], strides = [1, 1]} : vector<1x512xf32> to vector<1x128xf32>
    %74 = math.tanh %73 : vector<1x128xf32>
    %75 = vector.extract_strided_slice %60 {offsets = [0, 384], sizes = [1, 128], strides = [1, 1]} : vector<1x512xf32> to vector<1x128xf32>
    %76 = arith.negf %75 : vector<1x128xf32>
    %77 = math.exp %76 : vector<1x128xf32>
    %cst_41 = arith.constant 1.000000e+00 : f32
    %78 = vector.broadcast %cst_41 : f32 to vector<1x128xf32>
    %79 = arith.addf %78, %77 : vector<1x128xf32>
    %80 = arith.divf %78, %79 : vector<1x128xf32>
    %81 = arith.mulf %72, %48 : vector<1x128xf32>
    %82 = arith.mulf %66, %74 : vector<1x128xf32>
    %83 = arith.addf %81, %82 : vector<1x128xf32>
    %84 = math.tanh %83 : vector<1x128xf32>
    %85 = arith.mulf %80, %84 : vector<1x128xf32>
    %c1_42 = arith.constant 1 : index
    %c0_43 = arith.constant 0 : index
    %c0_44 = arith.constant 0 : index
    %86 = vector.load %arg9[%c1_42, %c0_43, %c0_44] : memref<3x1x128xf32, #tpu.memory_space<vmem>>, vector<1x1x128xf32>
    %87 = vector.shape_cast %86 : vector<1x1x128xf32> to vector<1x128xf32>
    %88 = vector.shape_cast %85 : vector<1x128xf32> to vector<1x1x128xf32>
    tpu.vector_store %arg9[%c1_42, %c0_43, %c0_44], %88 {strides = array<i32>} : memref<3x1x128xf32, #tpu.memory_space<vmem>>, vector<1x1x128xf32>,
    %c1_45 = arith.constant 1 : index
    %c0_46 = arith.constant 0 : index
    %c0_47 = arith.constant 0 : index
    %89 = vector.load %arg10[%c1_45, %c0_46, %c0_47] : memref<3x1x128xf32, #tpu.memory_space<vmem>>, vector<1x1x128xf32>
    %90 = vector.shape_cast %89 : vector<1x1x128xf32> to vector<1x128xf32>
    %91 = vector.shape_cast %83 : vector<1x128xf32> to vector<1x1x128xf32>
    tpu.vector_store %arg10[%c1_45, %c0_46, %c0_47], %91 {strides = array<i32>} : memref<3x1x128xf32, #tpu.memory_space<vmem>>, vector<1x1x128xf32>,
    %c2 = arith.constant 2 : index
    %c0_48 = arith.constant 0 : index
    %c0_49 = arith.constant 0 : index
    %92 = vector.load %arg6[%c2, %c0_48, %c0_49] : memref<3x1x128xf32, #tpu.memory_space<vmem>>, vector<1x1x128xf32>
    %93 = vector.shape_cast %92 : vector<1x1x128xf32> to vector<1x128xf32>
    %c2_50 = arith.constant 2 : index
    %c0_51 = arith.constant 0 : index
    %c0_52 = arith.constant 0 : index
    %94 = vector.load %arg7[%c2_50, %c0_51, %c0_52] : memref<3x1x128xf32, #tpu.memory_space<vmem>>, vector<1x1x128xf32>
    %95 = vector.shape_cast %94 : vector<1x1x128xf32> to vector<1x128xf32>
    %96 = arith.truncf %85 : vector<1x128xf32> to vector<1x128xbf16>
    %c1_53 = arith.constant 1 : index
    %c0_54 = arith.constant 0 : index
    %c0_55 = arith.constant 0 : index
    %97 = vector.load %arg3[%c1_53, %c0_54, %c0_55] : memref<2x128x512xbf16, #tpu.memory_space<vmem>>, vector<1x128x512xbf16>
    %98 = vector.shape_cast %97 : vector<1x128x512xbf16> to vector<128x512xbf16>
    %cst_56 = arith.constant dense<0.000000e+00> : vector<1x512xf32>
    %99 = tpu.matmul %96, %98, %cst_56 {dimension_numbers = #tpu.dot_dimension_numbers<[1], [0], [0], [1], [0, 0, 1, 1], [], []>} : vector<1x128xbf16>, vector<128x512xbf16>, vector<1x512xf32> -> vector<1x512xf32>
    %100 = arith.truncf %93 : vector<1x128xf32> to vector<1x128xbf16>
    %c2_57 = arith.constant 2 : index
    %c0_58 = arith.constant 0 : index
    %c0_59 = arith.constant 0 : index
    %101 = vector.load %arg4[%c2_57, %c0_58, %c0_59] : memref<3x128x512xbf16, #tpu.memory_space<vmem>>, vector<1x128x512xbf16>
    %102 = vector.shape_cast %101 : vector<1x128x512xbf16> to vector<128x512xbf16>
    %cst_60 = arith.constant dense<0.000000e+00> : vector<1x512xf32>
    %103 = tpu.matmul %100, %102, %cst_60 {dimension_numbers = #tpu.dot_dimension_numbers<[1], [0], [0], [1], [0, 0, 1, 1], [], []>} : vector<1x128xbf16>, vector<128x512xbf16>, vector<1x512xf32> -> vector<1x512xf32>
    %104 = arith.addf %99, %103 : vector<1x512xf32>
    %c2_61 = arith.constant 2 : index
    %c0_62 = arith.constant 0 : index
    %c0_63 = arith.constant 0 : index
    %105 = vector.load %arg5[%c2_61, %c0_62, %c0_63] : memref<3x1x512xf32, #tpu.memory_space<vmem>>, vector<1x1x512xf32>
    %106 = vector.shape_cast %105 : vector<1x1x512xf32> to vector<1x512xf32>
    %107 = arith.addf %104, %106 : vector<1x512xf32>
    %108 = vector.extract_strided_slice %107 {offsets = [0, 0], sizes = [1, 128], strides = [1, 1]} : vector<1x512xf32> to vector<1x128xf32>
    %109 = arith.negf %108 : vector<1x128xf32>
    %110 = math.exp %109 : vector<1x128xf32>
    %cst_64 = arith.constant 1.000000e+00 : f32
    %111 = vector.broadcast %cst_64 : f32 to vector<1x128xf32>
    %112 = arith.addf %111, %110 : vector<1x128xf32>
    %113 = arith.divf %111, %112 : vector<1x128xf32>
    %114 = vector.extract_strided_slice %107 {offsets = [0, 128], sizes = [1, 128], strides = [1, 1]} : vector<1x512xf32> to vector<1x128xf32>
    %115 = arith.negf %114 : vector<1x128xf32>
    %116 = math.exp %115 : vector<1x128xf32>
    %cst_65 = arith.constant 1.000000e+00 : f32
    %117 = vector.broadcast %cst_65 : f32 to vector<1x128xf32>
    %118 = arith.addf %117, %116 : vector<1x128xf32>
    %119 = arith.divf %117, %118 : vector<1x128xf32>
    %120 = vector.extract_strided_slice %107 {offsets = [0, 256], sizes = [1, 128], strides = [1, 1]} : vector<1x512xf32> to vector<1x128xf32>
    %121 = math.tanh %120 : vector<1x128xf32>
    %122 = vector.extract_strided_slice %107 {offsets = [0, 384], sizes = [1, 128], strides = [1, 1]} : vector<1x512xf32> to vector<1x128xf32>
    %123 = arith.negf %122 : vector<1x128xf32>
    %124 = math.exp %123 : vector<1x128xf32>
    %cst_66 = arith.constant 1.000000e+00 : f32
    %125 = vector.broadcast %cst_66 : f32 to vector<1x128xf32>
    %126 = arith.addf %125, %124 : vector<1x128xf32>
    %127 = arith.divf %125, %126 : vector<1x128xf32>
    %128 = arith.mulf %119, %95 : vector<1x128xf32>
    %129 = arith.mulf %113, %121 : vector<1x128xf32>
    %130 = arith.addf %128, %129 : vector<1x128xf32>
    %131 = math.tanh %130 : vector<1x128xf32>
    %132 = arith.mulf %127, %131 : vector<1x128xf32>
    %c2_67 = arith.constant 2 : index
    %c0_68 = arith.constant 0 : index
    %c0_69 = arith.constant 0 : index
    %133 = vector.load %arg9[%c2_67, %c0_68, %c0_69] : memref<3x1x128xf32, #tpu.memory_space<vmem>>, vector<1x1x128xf32>
    %134 = vector.shape_cast %133 : vector<1x1x128xf32> to vector<1x128xf32>
    %135 = vector.shape_cast %132 : vector<1x128xf32> to vector<1x1x128xf32>
    tpu.vector_store %arg9[%c2_67, %c0_68, %c0_69], %135 {strides = array<i32>} : memref<3x1x128xf32, #tpu.memory_space<vmem>>, vector<1x1x128xf32>,
    %c2_70 = arith.constant 2 : index
    %c0_71 = arith.constant 0 : index
    %c0_72 = arith.constant 0 : index
    %136 = vector.load %arg10[%c2_70, %c0_71, %c0_72] : memref<3x1x128xf32, #tpu.memory_space<vmem>>, vector<1x1x128xf32>
    %137 = vector.shape_cast %136 : vector<1x1x128xf32> to vector<1x128xf32>
    %138 = vector.shape_cast %130 : vector<1x128xf32> to vector<1x1x128xf32>
    tpu.vector_store %arg10[%c2_70, %c0_71, %c0_72], %138 {strides = array<i32>} : memref<3x1x128xf32, #tpu.memory_space<vmem>>, vector<1x1x128xf32>,
    %c0_73 = arith.constant 0 : index
    %c0_74 = arith.constant 0 : index
    %c0_75 = arith.constant 0 : index
    %139 = vector.load %arg8[%c0_73, %c0_74, %c0_75] : memref<1x1x128xf32, #tpu.memory_space<vmem>>, vector<1x1x128xf32>
    %140 = vector.shape_cast %139 : vector<1x1x128xf32> to vector<1x128xf32>
    %141 = vector.shape_cast %132 : vector<1x128xf32> to vector<1x1x128xf32>
    tpu.vector_store %arg8[%c0_73, %c0_74, %c0_75], %141 {strides = array<i32>} : memref<1x1x128xf32, #tpu.memory_space<vmem>>, vector<1x1x128xf32>,
    return
  }
  func.func @transform_0(%arg0: i32, %arg1: memref<1xi32, #tpu.memory_space<smem>>) -> (i32, i32, i32) {
    %c0 = arith.constant 0 : index
    %0 = memref.load %arg1[%c0] : memref<1xi32, #tpu.memory_space<smem>>
    %c0_i32 = arith.constant 0 : i32
    %c0_i32_0 = arith.constant 0 : i32
    %c0_i32_1 = arith.constant 0 : i32
    return %0, %c0_i32, %c0_i32_0 : i32, i32, i32
  }
  func.func @transform_1(%arg0: i32, %arg1: memref<1xi32, #tpu.memory_space<smem>>) -> (i32, i32, i32) {
    %c0_i32 = arith.constant 0 : i32
    %c0_i32_0 = arith.constant 0 : i32
    %c0_i32_1 = arith.constant 0 : i32
    %c0_i32_2 = arith.constant 0 : i32
    return %c0_i32, %c0_i32_0, %c0_i32_1 : i32, i32, i32
  }
  func.func @transform_2(%arg0: i32, %arg1: memref<1xi32, #tpu.memory_space<smem>>) -> (i32, i32, i32) {
    %c0_i32 = arith.constant 0 : i32
    %c0_i32_0 = arith.constant 0 : i32
    %c0_i32_1 = arith.constant 0 : i32
    %c0_i32_2 = arith.constant 0 : i32
    return %c0_i32, %c0_i32_0, %c0_i32_1 : i32, i32, i32
  }
  func.func @transform_3(%arg0: i32, %arg1: memref<1xi32, #tpu.memory_space<smem>>) -> (i32, i32, i32) {
    %c0_i32 = arith.constant 0 : i32
    %c0_i32_0 = arith.constant 0 : i32
    %c0_i32_1 = arith.constant 0 : i32
    %c0_i32_2 = arith.constant 0 : i32
    return %c0_i32, %c0_i32_0, %c0_i32_1 : i32, i32, i32
  }
  func.func @transform_4(%arg0: i32, %arg1: memref<1xi32, #tpu.memory_space<smem>>) -> (i32, i32, i32) {
    %c0_i32 = arith.constant 0 : i32
    %c0_i32_0 = arith.constant 0 : i32
    %c0_i32_1 = arith.constant 0 : i32
    %c0_i32_2 = arith.constant 0 : i32
    return %c0_i32, %c0_i32_0, %c0_i32_1 : i32, i32, i32
  }
  func.func @transform_5(%arg0: i32, %arg1: memref<1xi32, #tpu.memory_space<smem>>) -> (i32, i32, i32) {
    %c0_i32 = arith.constant 0 : i32
    %c0_i32_0 = arith.constant 0 : i32
    %c0_i32_1 = arith.constant 0 : i32
    %c0_i32_2 = arith.constant 0 : i32
    return %c0_i32, %c0_i32_0, %c0_i32_1 : i32, i32, i32
  }
  func.func @transform_6(%arg0: i32, %arg1: memref<1xi32, #tpu.memory_space<smem>>) -> (i32, i32, i32) {
    %c0_i32 = arith.constant 0 : i32
    %c0_i32_0 = arith.constant 0 : i32
    %c0_i32_1 = arith.constant 0 : i32
    %c0_i32_2 = arith.constant 0 : i32
    return %c0_i32, %c0_i32_0, %c0_i32_1 : i32, i32, i32
  }
  func.func @transform_7(%arg0: i32, %arg1: memref<1xi32, #tpu.memory_space<smem>>) -> (i32, i32, i32) {
    %c0_i32 = arith.constant 0 : i32
    %c0_i32_0 = arith.constant 0 : i32
    %c0_i32_1 = arith.constant 0 : i32
    %c0_i32_2 = arith.constant 0 : i32
    return %c0_i32, %c0_i32_0, %c0_i32_1 : i32, i32, i32
  }
  func.func @transform_8(%arg0: i32, %arg1: memref<1xi32, #tpu.memory_space<smem>>) -> (i32, i32, i32) {
    %c0_i32 = arith.constant 0 : i32
    %c0_i32_0 = arith.constant 0 : i32
    %c0_i32_1 = arith.constant 0 : i32
    %c0_i32_2 = arith.constant 0 : i32
    return %c0_i32, %c0_i32_0, %c0_i32_1 : i32, i32, i32
  }
}

</mosaic_0001>

<llo_original>
// kernel: lstm_pro_encoder_forward.1
$region0: #{lstm_pro_encoder_forward.1}
  #allocation0 [shape = 'u32[]', space=smem, size = 0x4, offset = 0x4, fixed_abs, tag = 'smem constant byte address 0x4 - core index']
  #allocation1 [shape = 'u32[144,128]{1,0:T(1,128)}', space=vmem, size = 0x12000, scoped, tag = 'internal scratch']
  #allocation2 [shape = 's32[1]{0}', space=sflag, size = 0x4, scoped, tag = 'scoped memory for lstm_pro_encoder_forward.1']
  #allocation3 [shape = 's32[1]{0:T(128)S(6)}', space=smem, size = 0x200, scoped, tag = 'prefetched SMEM operand 0']
  %s0 = inlined_call_operand.<no memory space> [shape: s32[1], index: 0, kind: input, shape index: {}]
  %s1 = inlined_call_operand.hbm [shape: f32[16,1,512], index: 1, kind: input, shape index: {}]
  %s2 = inlined_call_operand.hbm [shape: bf16[2,128,512], index: 2, kind: input, shape index: {}]
  %s3 = inlined_call_operand.hbm [shape: bf16[3,128,512], index: 3, kind: input, shape index: {}]
  %s4 = inlined_call_operand.vmem [shape: f32[3,1,512], index: 4, kind: input, shape index: {}]
  %s5 = inlined_call_operand.vmem [shape: f32[3,1,128], index: 5, kind: input, shape index: {}]
  %s6 = inlined_call_operand.vmem [shape: f32[3,1,128], index: 6, kind: input, shape index: {}]
  %s7 = inlined_call_operand.hbm [shape: f32[1,1,128], index: 7, kind: output, shape index: {0}]
  %s8 = inlined_call_operand.hbm [shape: f32[3,1,128], index: 8, kind: output, shape index: {1}]
  %s9 = inlined_call_operand.hbm [shape: f32[3,1,128], index: 9, kind: output, shape index: {2}]
  %10 = xla_tuple %s7, %s8, %s9
  %s11 = sld [smem:[#allocation0]]
  $region62: #{lstm_pro_encoder_forward.1} parent=0
    _
  %s13 = ssub.s32 1, %s11
  %s14 = scalar_select 0, %s13, %s11
  %15 = sst [smem:[#allocation3]] %s0
  $region1: #{lstm_pro_encoder_forward.1} parent=0
    #allocation4 [shape = 'u8[2048]{0}', space=vmem, size = 0x800, scoped, tag = 'input window, operand 1, single buffered']
    #allocation5 [shape = 's32[1]{0}', space=sflag, size = 0x4, scoped, tag = 'scoped memory for lstm_pro_encoder_forward.1']
    #allocation6 [shape = 's32[1]{0}', space=sflag, size = 0x4, scoped, tag = 'scoped memory for lstm_pro_encoder_forward.1']
    #allocation7 [shape = 'u8[262144]{0}', space=vmem, size = 0x40000, scoped, tag = 'input window, operand 2, single buffered']
    #allocation8 [shape = 's32[1]{0}', space=sflag, size = 0x4, scoped, tag = 'scoped memory for lstm_pro_encoder_forward.1']
    #allocation9 [shape = 'u8[393216]{0}', space=vmem, size = 0x60000, scoped, tag = 'input window, operand 3, single buffered']
    #allocation10 [shape = 'u8[512]{0}', space=vmem, size = 0x400, scoped, tag = 'output window, operand 0, single buffered']
    #allocation11 [shape = 'u8[1536]{0}', space=vmem, size = 0x800, scoped, tag = 'output window, operand 1, single buffered']
    #allocation12 [shape = 's32[1]{0}', space=sflag, size = 0x4, scoped, tag = 'scoped memory for lstm_pro_encoder_forward.1']
    #allocation13 [shape = 'u8[1536]{0}', space=vmem, size = 0x800, scoped, tag = 'output window, operand 2, single buffered']
    %16 = vsyncpa [#allocation5], 0
    %17 = vsyncpa [#allocation8], 0
    %18 = vsyncpa [#allocation6], 0
    %19 = vsyncpa [#allocation12], 0
    // Predicated region
    $region2: #{lstm_pro_encoder_forward.1} parent=1 // pred_check
      _
    $region3: #{lstm_pro_encoder_forward.1} parent=1 // pred_check_branch
      %21 = sbr.rel (0) target = $region5
    $region4: #{lstm_pro_encoder_forward.1} parent=1 // pred_region
      %s22 = sld [smem:[#allocation3]]
      %s24 = ssub.s32 64, 64
      %25 = vsyncadd [#allocation5], %s24
      %s26 = smul.addr %s22, 4
      %s27 = smul.addr %s26, 16
      %s28 = scalar_lea.hbm %s1, %s27
      %s30 = sshll.u32 [#allocation4], 4
      %s31 = int_to_ptr.vmem [resolvable:$true] %s30
      %33 = dma.hbm_to_vmem [thread:$0]  %s28, 64, %s31, [#allocation5]
    $region5: #{lstm_pro_encoder_forward.1} parent=1 // pred_fallthru
      _
    // Predicated region
    $region6: #{lstm_pro_encoder_forward.1} parent=1 // pred_check
      _
    $region7: #{lstm_pro_encoder_forward.1} parent=1 // pred_check_branch
      %35 = sbr.rel (0) target = $region9
    $region8: #{lstm_pro_encoder_forward.1} parent=1 // pred_region
      %s37 = ssub.s32 8192, 8192
      %38 = vsyncadd [#allocation8], %s37
      %s39 = sshll.u32 [#allocation7], 4
      %s40 = int_to_ptr.vmem [resolvable:$true] %s39
      %45 = dma.hbm_to_vmem [thread:$0]  %s2, 8192, %s40, [#allocation8], 256, 256, 16
    $region9: #{lstm_pro_encoder_forward.1} parent=1 // pred_fallthru
      _
    // Predicated region
    $region10: #{lstm_pro_encoder_forward.1} parent=1 // pred_check
      _
    $region11: #{lstm_pro_encoder_forward.1} parent=1 // pred_check_branch
      %47 = sbr.rel (0) target = $region13
    $region12: #{lstm_pro_encoder_forward.1} parent=1 // pred_region
      %s49 = ssub.s32 12288, 12288
      %50 = vsyncadd [#allocation8], %s49
      %s51 = sshll.u32 [#allocation9], 4
      %s52 = int_to_ptr.vmem [resolvable:$true] %s51
      %57 = dma.hbm_to_vmem [thread:$0]  %s3, 12288, %s52, [#allocation8], 256, 256, 16
    $region13: #{lstm_pro_encoder_forward.1} parent=1 // pred_fallthru
      _
    // Predicated region
    $region14: #{lstm_pro_encoder_forward.1} parent=1 // pred_check
      _
    $region15: #{lstm_pro_encoder_forward.1} parent=1 // pred_check_branch
      %59 = sbr.rel (0) target = $region17
    $region16: #{lstm_pro_encoder_forward.1} parent=1 // pred_region
      _
    $region17: #{lstm_pro_encoder_forward.1} parent=1 // pred_fallthru
      _
    // Predicated region
    $region18: #{lstm_pro_encoder_forward.1} parent=1 // pred_check
      _
    $region19: #{lstm_pro_encoder_forward.1} parent=1 // pred_check_branch
      %61 = sbr.rel (0) target = $region21
    $region20: #{lstm_pro_encoder_forward.1} parent=1 // pred_region
      _
    $region21: #{lstm_pro_encoder_forward.1} parent=1 // pred_fallthru
      _
    // Predicated region
    $region22: #{lstm_pro_encoder_forward.1} parent=1 // pred_check
      _
    $region23: #{lstm_pro_encoder_forward.1} parent=1 // pred_check_branch
      %63 = sbr.rel (0) target = $region25
    $region24: #{lstm_pro_encoder_forward.1} parent=1 // pred_region
      _
    $region25: #{lstm_pro_encoder_forward.1} parent=1 // pred_fallthru
      _
    // Predicated region
    $region26: #{lstm_pro_encoder_forward.1} parent=1 // pred_check
      _
    $region27: #{lstm_pro_encoder_forward.1} parent=1 // pred_check_branch
      %65 = sbr.rel (0) target = $region29
    $region28: #{lstm_pro_encoder_forward.1} parent=1 // pred_region
      %66 = dma.done [#allocation5], 64
    $region29: #{lstm_pro_encoder_forward.1} parent=1 // pred_fallthru
      _
    // Predicated region
    $region30: #{lstm_pro_encoder_forward.1} parent=1 // pred_check
      _
    $region31: #{lstm_pro_encoder_forward.1} parent=1 // pred_check_branch
      %68 = sbr.rel (0) target = $region33
    $region32: #{lstm_pro_encoder_forward.1} parent=1 // pred_region
      %69 = dma.done [#allocation8], 8192
    $region33: #{lstm_pro_encoder_forward.1} parent=1 // pred_fallthru
      _
    // Predicated region
    $region34: #{lstm_pro_encoder_forward.1} parent=1 // pred_check
      _
    $region35: #{lstm_pro_encoder_forward.1} parent=1 // pred_check_branch
      %71 = sbr.rel (0) target = $region37
    $region36: #{lstm_pro_encoder_forward.1} parent=1 // pred_region
      %72 = dma.done [#allocation8], 12288
    $region37: #{lstm_pro_encoder_forward.1} parent=1 // pred_fallthru
      _
    %s73 = sld [smem:[#allocation3]]
    %v75 = vld [vmem:[%s5] sm:$0x1]
    %v76 = vld [vmem:[%s6] sm:$0x1]
    %v77 = vld [vmem:[#allocation4] sm:$0xf]
    %v78 = vpack.c.bf16 %v75, %v75
    %v79 = vld [vmem:[#allocation9] sm:$0xff]
    %v80 = vld [vmem:[#allocation9 + $0x8] sm:$0xff]
    %v81 = vld [vmem:[#allocation9 + $0x10] sm:$0xff]
    %v82 = vld [vmem:[#allocation9 + $0x18] sm:$0xff]
    %v83 = vld [vmem:[#allocation9 + $0x20] sm:$0xff]
    %v84 = vld [vmem:[#allocation9 + $0x28] sm:$0xff]
    %v85 = vld [vmem:[#allocation9 + $0x30] sm:$0xff]
    %v86 = vld [vmem:[#allocation9 + $0x38] sm:$0xff]
    %v87 = vld [vmem:[#allocation9 + $0x40] sm:$0xff]
    %v88 = vld [vmem:[#allocation9 + $0x48] sm:$0xff]
    %v89 = vld [vmem:[#allocation9 + $0x50] sm:$0xff]
    %v90 = vld [vmem:[#allocation9 + $0x58] sm:$0xff]
    %v91 = vld [vmem:[#allocation9 + $0x60] sm:$0xff]
    %v92 = vld [vmem:[#allocation9 + $0x68] sm:$0xff]
    %v93 = vld [vmem:[#allocation9 + $0x70] sm:$0xff]
    %v94 = vld [vmem:[#allocation9 + $0x78] sm:$0xff]
    %v95 = vld [vmem:[#allocation9 + $0x80] sm:$0xff]
    %v96 = vld [vmem:[#allocation9 + $0x88] sm:$0xff]
    %v97 = vld [vmem:[#allocation9 + $0x90] sm:$0xff]
    %v98 = vld [vmem:[#allocation9 + $0x98] sm:$0xff]
    %v99 = vld [vmem:[#allocation9 + $0xa0] sm:$0xff]
    %v100 = vld [vmem:[#allocation9 + $0xa8] sm:$0xff]
    %v101 = vld [vmem:[#allocation9 + $0xb0] sm:$0xff]
    %v102 = vld [vmem:[#allocation9 + $0xb8] sm:$0xff]
    %v103 = vld [vmem:[#allocation9 + $0xc0] sm:$0xff]
    %v104 = vld [vmem:[#allocation9 + $0xc8] sm:$0xff]
    %v105 = vld [vmem:[#allocation9 + $0xd0] sm:$0xff]
    %v106 = vld [vmem:[#allocation9 + $0xd8] sm:$0xff]
    %v107 = vld [vmem:[#allocation9 + $0xe0] sm:$0xff]
    %v108 = vld [vmem:[#allocation9 + $0xe8] sm:$0xff]
    %v109 = vld [vmem:[#allocation9 + $0xf0] sm:$0xff]
    %v110 = vld [vmem:[#allocation9 + $0xf8] sm:$0xff]
    %v143 = vunpack.c.l.b16 %v79
    %v144 = vunpack.c.h.b16 %v79
    %v145 = vunpack.c.l.b16 %v80
    %v146 = vunpack.c.h.b16 %v80
    %v147 = vunpack.c.l.b16 %v81
    %v148 = vunpack.c.h.b16 %v81
    %v149 = vunpack.c.l.b16 %v82
    %v150 = vunpack.c.h.b16 %v82
    %v151 = vunpack.c.l.b16 %v83
    %v152 = vunpack.c.h.b16 %v83
    %v153 = vunpack.c.l.b16 %v84
    %v154 = vunpack.c.h.b16 %v84
    %v155 = vunpack.c.l.b16 %v85
    %v156 = vunpack.c.h.b16 %v85
    %v157 = vunpack.c.l.b16 %v86
    %v158 = vunpack.c.h.b16 %v86
    %v159 = vunpack.c.l.b16 %v87
    %v160 = vunpack.c.h.b16 %v87
    %v161 = vunpack.c.l.b16 %v88
    %v162 = vunpack.c.h.b16 %v88
    %v163 = vunpack.c.l.b16 %v89
    %v164 = vunpack.c.h.b16 %v89
    %v165 = vunpack.c.l.b16 %v90
    %v166 = vunpack.c.h.b16 %v90
    %v167 = vunpack.c.l.b16 %v91
    %v168 = vunpack.c.h.b16 %v91
    %v169 = vunpack.c.l.b16 %v92
    %v170 = vunpack.c.h.b16 %v92
    %v171 = vunpack.c.l.b16 %v93
    %v172 = vunpack.c.h.b16 %v93
    %v173 = vunpack.c.l.b16 %v94
    %v174 = vunpack.c.h.b16 %v94
    %v175 = vunpack.c.l.b16 %v95
    %v176 = vunpack.c.h.b16 %v95
    %v177 = vunpack.c.l.b16 %v96
    %v178 = vunpack.c.h.b16 %v96
    %v179 = vunpack.c.l.b16 %v97
    %v180 = vunpack.c.h.b16 %v97
    %v181 = vunpack.c.l.b16 %v98
    %v182 = vunpack.c.h.b16 %v98
    %v183 = vunpack.c.l.b16 %v99
    %v184 = vunpack.c.h.b16 %v99
    %v185 = vunpack.c.l.b16 %v100
    %v186 = vunpack.c.h.b16 %v100
    %v187 = vunpack.c.l.b16 %v101
    %v188 = vunpack.c.h.b16 %v101
    %v189 = vunpack.c.l.b16 %v102
    %v190 = vunpack.c.h.b16 %v102
    %v191 = vunpack.c.l.b16 %v103
    %v192 = vunpack.c.h.b16 %v103
    %v193 = vunpack.c.l.b16 %v104
    %v194 = vunpack.c.h.b16 %v104
    %v195 = vunpack.c.l.b16 %v105
    %v196 = vunpack.c.h.b16 %v105
    %v197 = vunpack.c.l.b16 %v106
    %v198 = vunpack.c.h.b16 %v106
    %v199 = vunpack.c.l.b16 %v107
    %v200 = vunpack.c.h.b16 %v107
    %v201 = vunpack.c.l.b16 %v108
    %v202 = vunpack.c.h.b16 %v108
    %v203 = vunpack.c.l.b16 %v109
    %v204 = vunpack.c.h.b16 %v109
    %v205 = vunpack.c.l.b16 %v110
    %v206 = vunpack.c.h.b16 %v110
    %v207 = vpack.c.b16 %v147, %v143
    %v208 = vpack.c.b16 %v148, %v144
    %v209 = vpack.c.b16 %v149, %v145
    %v210 = vpack.c.b16 %v150, %v146
    %v211 = vpack.c.b16 %v155, %v151
    %v212 = vpack.c.b16 %v156, %v152
    %v213 = vpack.c.b16 %v157, %v153
    %v214 = vpack.c.b16 %v158, %v154
    %v215 = vpack.c.b16 %v163, %v159
    %v216 = vpack.c.b16 %v164, %v160
    %v217 = vpack.c.b16 %v165, %v161
    %v218 = vpack.c.b16 %v166, %v162
    %v219 = vpack.c.b16 %v171, %v167
    %v220 = vpack.c.b16 %v172, %v168
    %v221 = vpack.c.b16 %v173, %v169
    %v222 = vpack.c.b16 %v174, %v170
    %v223 = vpack.c.b16 %v179, %v175
    %v224 = vpack.c.b16 %v180, %v176
    %v225 = vpack.c.b16 %v181, %v177
    %v226 = vpack.c.b16 %v182, %v178
    %v227 = vpack.c.b16 %v187, %v183
    %v228 = vpack.c.b16 %v188, %v184
    %v229 = vpack.c.b16 %v189, %v185
    %v230 = vpack.c.b16 %v190, %v186
    %v231 = vpack.c.b16 %v195, %v191
    %v232 = vpack.c.b16 %v196, %v192
    %v233 = vpack.c.b16 %v197, %v193
    %v234 = vpack.c.b16 %v198, %v194
    %v235 = vpack.c.b16 %v203, %v199
    %v236 = vpack.c.b16 %v204, %v200
    %v237 = vpack.c.b16 %v205, %v201
    %v238 = vpack.c.b16 %v206, %v202
    %271 = vmatprep.subr.bf16.mxu0 %v208
    %272 = vmatpush1.bf16.msra.mxu0 %v207
    %273 = vmatprep.subr.bf16.mxu0 %v212
    %274 = vmatpush1.bf16.msra.mxu0 %v211
    %275 = vmatprep.subr.bf16.mxu0 %v216
    %276 = vmatpush1.bf16.msra.mxu0 %v215
    %277 = vmatprep.subr.bf16.mxu0 %v220
    %278 = vmatpush1.bf16.msra.mxu0 %v219
    %279 = vmatprep.subr.bf16.mxu0 %v224
    %280 = vmatpush1.bf16.msra.mxu0 %v223
    %281 = vmatprep.subr.bf16.mxu0 %v228
    %282 = vmatpush1.bf16.msra.mxu0 %v227
    %283 = vmatprep.subr.bf16.mxu0 %v232
    %284 = vmatpush1.bf16.msra.mxu0 %v231
    %285 = vmatprep.subr.bf16.mxu0 %v236
    %286 = vmatpush1.bf16.msra.mxu0 %v235
    %287 = vmatprep.subr.bf16.mxu0 0
    %288 = vmatpush1.bf16.msra.mxu0 0
    %289 = vmatprep.subr.bf16.mxu0 0
    %290 = vmatpush1.bf16.msra.mxu0 0
    %291 = vmatprep.subr.bf16.mxu0 0
    %292 = vmatpush1.bf16.msra.mxu0 0
    %293 = vmatprep.subr.bf16.mxu0 0
    %294 = vmatpush1.bf16.msra.mxu0 0
    %295 = vmatprep.subr.bf16.mxu0 0
    %296 = vmatpush1.bf16.msra.mxu0 0
    %297 = vmatprep.subr.bf16.mxu0 0
    %298 = vmatpush1.bf16.msra.mxu0 0
    %299 = vmatprep.subr.bf16.mxu0 0
    %300 = vmatpush1.bf16.msra.mxu0 0
    %301 = vmatprep.subr.bf16.mxu0 0
    %302 = vmatpush1.bf16.msra.mxu0 0
    %303 = vmatprep.mubr.bf16.mxu0 0
    %304 = vmatmul.mubr.bf16.gmra.mrb[0].mxu0 %v78
    %v305 = vpop.f32.mrb[0].mxu0
    %v306 = vadd.f32 0.0, %v305
    %v307 = vpop.f32.mrb[0].mxu0
    %v308 = vadd.f32 0.0, %v307
    %v309 = vpop.f32.mrb[0].mxu0
    %v310 = vpop.f32.mrb[0].mxu0
    %311 = vdwg.mxu0
    %312 = vmatprep.subr.bf16.mxu0 %v210
    %313 = vmatpush1.bf16.msra.mxu0 %v209
    %314 = vmatprep.subr.bf16.mxu0 %v214
    %315 = vmatpush1.bf16.msra.mxu0 %v213
    %316 = vmatprep.subr.bf16.mxu0 %v218
    %317 = vmatpush1.bf16.msra.mxu0 %v217
    %318 = vmatprep.subr.bf16.mxu0 %v222
    %319 = vmatpush1.bf16.msra.mxu0 %v221
    %320 = vmatprep.subr.bf16.mxu0 %v226
    %321 = vmatpush1.bf16.msra.mxu0 %v225
    %322 = vmatprep.subr.bf16.mxu0 %v230
    %323 = vmatpush1.bf16.msra.mxu0 %v229
    %324 = vmatprep.subr.bf16.mxu0 %v234
    %325 = vmatpush1.bf16.msra.mxu0 %v233
    %326 = vmatprep.subr.bf16.mxu0 %v238
    %327 = vmatpush1.bf16.msra.mxu0 %v237
    %328 = vmatprep.subr.bf16.mxu0 0
    %329 = vmatpush1.bf16.msra.mxu0 0
    %330 = vmatprep.subr.bf16.mxu0 0
    %331 = vmatpush1.bf16.msra.mxu0 0
    %332 = vmatprep.subr.bf16.mxu0 0
    %333 = vmatpush1.bf16.msra.mxu0 0
    %334 = vmatprep.subr.bf16.mxu0 0
    %335 = vmatpush1.bf16.msra.mxu0 0
    %336 = vmatprep.subr.bf16.mxu0 0
    %337 = vmatpush1.bf16.msra.mxu0 0
    %338 = vmatprep.subr.bf16.mxu0 0
    %339 = vmatpush1.bf16.msra.mxu0 0
    %340 = vmatprep.subr.bf16.mxu0 0
    %341 = vmatpush1.bf16.msra.mxu0 0
    %342 = vmatprep.subr.bf16.mxu0 0
    %343 = vmatpush1.bf16.msra.mxu0 0
    %344 = vmatprep.mubr.bf16.mxu0 0
    %345 = vmatmul.mubr.bf16.gmra.mrb[0].mxu0 %v78
    %v346 = vpop.f32.mrb[0].mxu0
    %v347 = vadd.f32 0.0, %v346
    %v348 = vpop.f32.mrb[0].mxu0
    %v349 = vadd.f32 0.0, %v348
    %v350 = vpop.f32.mrb[0].mxu0
    %v351 = vpop.f32.mrb[0].mxu0
    %352 = vdwg.mxu0
    %v357 = vcombine.low %v306, %v308
    %v358 = vcombine.low %v347, %v349
    %v360 = vunpack.c.l.s4 1966171168
    %v361 = vunpack.c.0.s8 %v360
    %v362 = vlaneseq
    %v363 = vshrl.u32 %v362, 7
    %v364 = vsub.s32 %v361, %v363
    %v365 = vrot.slane %v357, %v364
    %v367 = vunpack.c.l.s4 1966171168
    %v368 = vunpack.c.0.s8 %v367
    %v369 = vlaneseq
    %v370 = vshrl.u32 %v369, 7
    %v371 = vsub.s32 %v368, %v370
    %v372 = vrot.slane %v358, %v371
    %v373 = vcombine.low %v365, %v372
    %v375 = vunpack.c.l.s4 1966171168
    %v376 = vunpack.c.0.s8 %v375
    %v377 = vlaneseq
    %v378 = vshrl.u32 %v377, 7
    %v379 = vsub.s32 %v376, %v378
    %v380 = vrot.slane %v373, %v379
    %v382 = vadd.f32 %v77, %v380
    %v383 = vld [vmem:[%s4] sm:$0xf]
    %v384 = vadd.f32 %v382, %v383
    %v385 = vxor.u32 %v384, 2147483648
    %v386 = vmul.f32 %v385, 1.442695
    %v387 = vpow.pop %v386
    %v388 = vadd.f32 %v387, 1.0
    %v389 = vrcp.pop %v388
    %v390 = vmul.f32 1.0, %v389
    %v392 = vrot.slane %v384, 1
    %v394 = vxor.u32 %v392, 2147483648
    %v395 = vmul.f32 %v394, 1.442695
    %v396 = vpow.pop %v395
    %v397 = vadd.f32 %v396, 1.0
    %v398 = vrcp.pop %v397
    %v399 = vmul.f32 1.0, %v398
    %v400 = vrot.slane %v384, 2
    %v402 = vtanh.pop %v400
    %v403 = vrot.slane %v384, 3
    %v405 = vxor.u32 %v403, 2147483648
    %v406 = vmul.f32 %v405, 1.442695
    %v407 = vpow.pop %v406
    %v408 = vadd.f32 %v407, 1.0
    %v409 = vrcp.pop %v408
    %v410 = vmul.f32 1.0, %v409
    %v411 = vmul.f32 %v399, %v76
    %v412 = vmul.f32 %v390, %v402
    %v413 = vadd.f32 %v411, %v412
    %v414 = vtanh.pop %v413
    %v415 = vmul.f32 %v410, %v414
    %416 = vst [vmem:[#allocation11] sm:$0x1] %v415
    %417 = vst [vmem:[#allocation13] sm:$0x1] %v413
    %s418 = scalar_lea.vmem %s5, 1
    %v419 = vld [vmem:[%s418] sm:$0x1]
    %s420 = scalar_lea.vmem %s6, 1
    %v421 = vld [vmem:[%s420] sm:$0x1]
    %v422 = vpack.c.bf16 %v415, %v415
    %v423 = vld [vmem:[#allocation7] sm:$0xff]
    %v424 = vld [vmem:[#allocation7 + $0x8] sm:$0xff]
    %v425 = vld [vmem:[#allocation7 + $0x10] sm:$0xff]
    %v426 = vld [vmem:[#allocation7 + $0x18] sm:$0xff]
    %v427 = vld [vmem:[#allocation7 + $0x20] sm:$0xff]
    %v428 = vld [vmem:[#allocation7 + $0x28] sm:$0xff]
    %v429 = vld [vmem:[#allocation7 + $0x30] sm:$0xff]
    %v430 = vld [vmem:[#allocation7 + $0x38] sm:$0xff]
    %v431 = vld [vmem:[#allocation7 + $0x40] sm:$0xff]
    %v432 = vld [vmem:[#allocation7 + $0x48] sm:$0xff]
    %v433 = vld [vmem:[#allocation7 + $0x50] sm:$0xff]
    %v434 = vld [vmem:[#allocation7 + $0x58] sm:$0xff]
    %v435 = vld [vmem:[#allocation7 + $0x60] sm:$0xff]
    %v436 = vld [vmem:[#allocation7 + $0x68] sm:$0xff]
    %v437 = vld [vmem:[#allocation7 + $0x70] sm:$0xff]
    %v438 = vld [vmem:[#allocation7 + $0x78] sm:$0xff]
    %v439 = vld [vmem:[#allocation7 + $0x80] sm:$0xff]
    %v440 = vld [vmem:[#allocation7 + $0x88] sm:$0xff]
    %v441 = vld [vmem:[#allocation7 + $0x90] sm:$0xff]
    %v442 = vld [vmem:[#allocation7 + $0x98] sm:$0xff]
    %v443 = vld [vmem:[#allocation7 + $0xa0] sm:$0xff]
    %v444 = vld [vmem:[#allocation7 + $0xa8] sm:$0xff]
    %v445 = vld [vmem:[#allocation7 + $0xb0] sm:$0xff]
    %v446 = vld [vmem:[#allocation7 + $0xb8] sm:$0xff]
    %v447 = vld [vmem:[#allocation7 + $0xc0] sm:$0xff]
    %v448 = vld [vmem:[#allocation7 + $0xc8] sm:$0xff]
    %v449 = vld [vmem:[#allocation7 + $0xd0] sm:$0xff]
    %v450 = vld [vmem:[#allocation7 + $0xd8] sm:$0xff]
    %v451 = vld [vmem:[#allocation7 + $0xe0] sm:$0xff]
    %v452 = vld [vmem:[#allocation7 + $0xe8] sm:$0xff]
    %v453 = vld [vmem:[#allocation7 + $0xf0] sm:$0xff]
    %v454 = vld [vmem:[#allocation7 + $0xf8] sm:$0xff]
    %v455 = vpack.c.bf16 %v419, %v419
    %s456 = scalar_lea.vmem [#allocation9], 256
    %v457 = vld [vmem:[%s456] sm:$0xff]
    %v458 = vld [vmem:[%s456 + $0x8] sm:$0xff]
    %v459 = vld [vmem:[%s456 + $0x10] sm:$0xff]
    %v460 = vld [vmem:[%s456 + $0x18] sm:$0xff]
    %v461 = vld [vmem:[%s456 + $0x20] sm:$0xff]
    %v462 = vld [vmem:[%s456 + $0x28] sm:$0xff]
    %v463 = vld [vmem:[%s456 + $0x30] sm:$0xff]
    %v464 = vld [vmem:[%s456 + $0x38] sm:$0xff]
    %v465 = vld [vmem:[%s456 + $0x40] sm:$0xff]
    %v466 = vld [vmem:[%s456 + $0x48] sm:$0xff]
    %v467 = vld [vmem:[%s456 + $0x50] sm:$0xff]
    %v468 = vld [vmem:[%s456 + $0x58] sm:$0xff]
    %v469 = vld [vmem:[%s456 + $0x60] sm:$0xff]
    %v470 = vld [vmem:[%s456 + $0x68] sm:$0xff]
    %v471 = vld [vmem:[%s456 + $0x70] sm:$0xff]
    %v472 = vld [vmem:[%s456 + $0x78] sm:$0xff]
    %v473 = vld [vmem:[%s456 + $0x80] sm:$0xff]
    %v474 = vld [vmem:[%s456 + $0x88] sm:$0xff]
    %v475 = vld [vmem:[%s456 + $0x90] sm:$0xff]
    %v476 = vld [vmem:[%s456 + $0x98] sm:$0xff]
    %v477 = vld [vmem:[%s456 + $0xa0] sm:$0xff]
    %v478 = vld [vmem:[%s456 + $0xa8] sm:$0xff]
    %v479 = vld [vmem:[%s456 + $0xb0] sm:$0xff]
    %v480 = vld [vmem:[%s456 + $0xb8] sm:$0xff]
    %v481 = vld [vmem:[%s456 + $0xc0] sm:$0xff]
    %v482 = vld [vmem:[%s456 + $0xc8] sm:$0xff]
    %v483 = vld [vmem:[%s456 + $0xd0] sm:$0xff]
    %v484 = vld [vmem:[%s456 + $0xd8] sm:$0xff]
    %v485 = vld [vmem:[%s456 + $0xe0] sm:$0xff]
    %v486 = vld [vmem:[%s456 + $0xe8] sm:$0xff]
    %v487 = vld [vmem:[%s456 + $0xf0] sm:$0xff]
    %v488 = vld [vmem:[%s456 + $0xf8] sm:$0xff]
    %v521 = vunpack.c.l.b16 %v457
    %v522 = vunpack.c.h.b16 %v457
    %v523 = vunpack.c.l.b16 %v458
    %v524 = vunpack.c.h.b16 %v458
    %v525 = vunpack.c.l.b16 %v459
    %v526 = vunpack.c.h.b16 %v459
    %v527 = vunpack.c.l.b16 %v460
    %v528 = vunpack.c.h.b16 %v460
    %v529 = vunpack.c.l.b16 %v461
    %v530 = vunpack.c.h.b16 %v461
    %v531 = vunpack.c.l.b16 %v462
    %v532 = vunpack.c.h.b16 %v462
    %v533 = vunpack.c.l.b16 %v463
    %v534 = vunpack.c.h.b16 %v463
    %v535 = vunpack.c.l.b16 %v464
    %v536 = vunpack.c.h.b16 %v464
    %v537 = vunpack.c.l.b16 %v465
    %v538 = vunpack.c.h.b16 %v465
    %v539 = vunpack.c.l.b16 %v466
    %v540 = vunpack.c.h.b16 %v466
    %v541 = vunpack.c.l.b16 %v467
    %v542 = vunpack.c.h.b16 %v467
    %v543 = vunpack.c.l.b16 %v468
    %v544 = vunpack.c.h.b16 %v468
    %v545 = vunpack.c.l.b16 %v469
    %v546 = vunpack.c.h.b16 %v469
    %v547 = vunpack.c.l.b16 %v470
    %v548 = vunpack.c.h.b16 %v470
    %v549 = vunpack.c.l.b16 %v471
    %v550 = vunpack.c.h.b16 %v471
    %v551 = vunpack.c.l.b16 %v472
    %v552 = vunpack.c.h.b16 %v472
    %v553 = vunpack.c.l.b16 %v473
    %v554 = vunpack.c.h.b16 %v473
    %v555 = vunpack.c.l.b16 %v474
    %v556 = vunpack.c.h.b16 %v474
    %v557 = vunpack.c.l.b16 %v475
    %v558 = vunpack.c.h.b16 %v475
    %v559 = vunpack.c.l.b16 %v476
    %v560 = vunpack.c.h.b16 %v476
    %v561 = vunpack.c.l.b16 %v477
    %v562 = vunpack.c.h.b16 %v477
    %v563 = vunpack.c.l.b16 %v478
    %v564 = vunpack.c.h.b16 %v478
    %v565 = vunpack.c.l.b16 %v479
    %v566 = vunpack.c.h.b16 %v479
    %v567 = vunpack.c.l.b16 %v480
    %v568 = vunpack.c.h.b16 %v480
    %v569 = vunpack.c.l.b16 %v481
    %v570 = vunpack.c.h.b16 %v481
    %v571 = vunpack.c.l.b16 %v482
    %v572 = vunpack.c.h.b16 %v482
    %v573 = vunpack.c.l.b16 %v483
    %v574 = vunpack.c.h.b16 %v483
    %v575 = vunpack.c.l.b16 %v484
    %v576 = vunpack.c.h.b16 %v484
    %v577 = vunpack.c.l.b16 %v485
    %v578 = vunpack.c.h.b16 %v485
    %v579 = vunpack.c.l.b16 %v486
    %v580 = vunpack.c.h.b16 %v486
    %v581 = vunpack.c.l.b16 %v487
    %v582 = vunpack.c.h.b16 %v487
    %v583 = vunpack.c.l.b16 %v488
    %v584 = vunpack.c.h.b16 %v488
    %v585 = vpack.c.b16 %v525, %v521
    %v586 = vpack.c.b16 %v526, %v522
    %v587 = vpack.c.b16 %v527, %v523
    %v588 = vpack.c.b16 %v528, %v524
    %v589 = vpack.c.b16 %v533, %v529
    %v590 = vpack.c.b16 %v534, %v530
    %v591 = vpack.c.b16 %v535, %v531
    %v592 = vpack.c.b16 %v536, %v532
    %v593 = vpack.c.b16 %v541, %v537
    %v594 = vpack.c.b16 %v542, %v538
    %v595 = vpack.c.b16 %v543, %v539
    %v596 = vpack.c.b16 %v544, %v540
    %v597 = vpack.c.b16 %v549, %v545
    %v598 = vpack.c.b16 %v550, %v546
    %v599 = vpack.c.b16 %v551, %v547
    %v600 = vpack.c.b16 %v552, %v548
    %v601 = vpack.c.b16 %v557, %v553
    %v602 = vpack.c.b16 %v558, %v554
    %v603 = vpack.c.b16 %v559, %v555
    %v604 = vpack.c.b16 %v560, %v556
    %v605 = vpack.c.b16 %v565, %v561
    %v606 = vpack.c.b16 %v566, %v562
    %v607 = vpack.c.b16 %v567, %v563
    %v608 = vpack.c.b16 %v568, %v564
    %v609 = vpack.c.b16 %v573, %v569
    %v610 = vpack.c.b16 %v574, %v570
    %v611 = vpack.c.b16 %v575, %v571
    %v612 = vpack.c.b16 %v576, %v572
    %v613 = vpack.c.b16 %v581, %v577
    %v614 = vpack.c.b16 %v582, %v578
    %v615 = vpack.c.b16 %v583, %v579
    %v616 = vpack.c.b16 %v584, %v580
    %649 = vmatprep.subr.bf16.mxu0 %v586
    %650 = vmatpush1.bf16.msra.mxu0 %v585
    %651 = vmatprep.subr.bf16.mxu0 %v590
    %652 = vmatpush1.bf16.msra.mxu0 %v589
    %653 = vmatprep.subr.bf16.mxu0 %v594
    %654 = vmatpush1.bf16.msra.mxu0 %v593
    %655 = vmatprep.subr.bf16.mxu0 %v598
    %656 = vmatpush1.bf16.msra.mxu0 %v597
    %657 = vmatprep.subr.bf16.mxu0 %v602
    %658 = vmatpush1.bf16.msra.mxu0 %v601
    %659 = vmatprep.subr.bf16.mxu0 %v606
    %660 = vmatpush1.bf16.msra.mxu0 %v605
    %661 = vmatprep.subr.bf16.mxu0 %v610
    %662 = vmatpush1.bf16.msra.mxu0 %v609
    %663 = vmatprep.subr.bf16.mxu0 %v614
    %664 = vmatpush1.bf16.msra.mxu0 %v613
    %665 = vmatprep.subr.bf16.mxu0 0
    %666 = vmatpush1.bf16.msra.mxu0 0
    %667 = vmatprep.subr.bf16.mxu0 0
    %668 = vmatpush1.bf16.msra.mxu0 0
    %669 = vmatprep.subr.bf16.mxu0 0
    %670 = vmatpush1.bf16.msra.mxu0 0
    %671 = vmatprep.subr.bf16.mxu0 0
    %672 = vmatpush1.bf16.msra.mxu0 0
    %673 = vmatprep.subr.bf16.mxu0 0
    %674 = vmatpush1.bf16.msra.mxu0 0
    %675 = vmatprep.subr.bf16.mxu0 0
    %676 = vmatpush1.bf16.msra.mxu0 0
    %677 = vmatprep.subr.bf16.mxu0 0
    %678 = vmatpush1.bf16.msra.mxu0 0
    %679 = vmatprep.subr.bf16.mxu0 0
    %680 = vmatpush1.bf16.msra.mxu0 0
    %681 = vmatprep.mubr.bf16.mxu0 0
    %682 = vmatmul.mubr.bf16.gmra.mrb[0].mxu0 %v455
    %v683 = vpop.f32.mrb[0].mxu0
    %v684 = vadd.f32 0.0, %v683
    %v685 = vpop.f32.mrb[0].mxu0
    %v686 = vadd.f32 0.0, %v685
    %v687 = vpop.f32.mrb[0].mxu0
    %v688 = vpop.f32.mrb[0].mxu0
    %689 = vdwg.mxu0
    %690 = vmatprep.subr.bf16.mxu0 %v588
    %691 = vmatpush1.bf16.msra.mxu0 %v587
    %692 = vmatprep.subr.bf16.mxu0 %v592
    %693 = vmatpush1.bf16.msra.mxu0 %v591
    %694 = vmatprep.subr.bf16.mxu0 %v596
    %695 = vmatpush1.bf16.msra.mxu0 %v595
    %696 = vmatprep.subr.bf16.mxu0 %v600
    %697 = vmatpush1.bf16.msra.mxu0 %v599
    %698 = vmatprep.subr.bf16.mxu0 %v604
    %699 = vmatpush1.bf16.msra.mxu0 %v603
    %700 = vmatprep.subr.bf16.mxu0 %v608
    %701 = vmatpush1.bf16.msra.mxu0 %v607
    %702 = vmatprep.subr.bf16.mxu0 %v612
    %703 = vmatpush1.bf16.msra.mxu0 %v611
    %704 = vmatprep.subr.bf16.mxu0 %v616
    %705 = vmatpush1.bf16.msra.mxu0 %v615
    %706 = vmatprep.subr.bf16.mxu0 0
    %707 = vmatpush1.bf16.msra.mxu0 0
    %708 = vmatprep.subr.bf16.mxu0 0
    %709 = vmatpush1.bf16.msra.mxu0 0
    %710 = vmatprep.subr.bf16.mxu0 0
    %711 = vmatpush1.bf16.msra.mxu0 0
    %712 = vmatprep.subr.bf16.mxu0 0
    %713 = vmatpush1.bf16.msra.mxu0 0
    %714 = vmatprep.subr.bf16.mxu0 0
    %715 = vmatpush1.bf16.msra.mxu0 0
    %716 = vmatprep.subr.bf16.mxu0 0
    %717 = vmatpush1.bf16.msra.mxu0 0
    %718 = vmatprep.subr.bf16.mxu0 0
    %719 = vmatpush1.bf16.msra.mxu0 0
    %720 = vmatprep.subr.bf16.mxu0 0
    %721 = vmatpush1.bf16.msra.mxu0 0
    %722 = vmatprep.mubr.bf16.mxu0 0
    %723 = vmatmul.mubr.bf16.gmra.mrb[0].mxu0 %v455
    %v724 = vpop.f32.mrb[0].mxu0
    %v725 = vadd.f32 0.0, %v724
    %v726 = vpop.f32.mrb[0].mxu0
    %v727 = vadd.f32 0.0, %v726
    %v728 = vpop.f32.mrb[0].mxu0
    %v729 = vpop.f32.mrb[0].mxu0
    %730 = vdwg.mxu0
    %v763 = vunpack.c.l.b16 %v423
    %v764 = vunpack.c.h.b16 %v423
    %v765 = vunpack.c.l.b16 %v424
    %v766 = vunpack.c.h.b16 %v424
    %v767 = vunpack.c.l.b16 %v425
    %v768 = vunpack.c.h.b16 %v425
    %v769 = vunpack.c.l.b16 %v426
    %v770 = vunpack.c.h.b16 %v426
    %v771 = vunpack.c.l.b16 %v427
    %v772 = vunpack.c.h.b16 %v427
    %v773 = vunpack.c.l.b16 %v428
    %v774 = vunpack.c.h.b16 %v428
    %v775 = vunpack.c.l.b16 %v429
    %v776 = vunpack.c.h.b16 %v429
    %v777 = vunpack.c.l.b16 %v430
    %v778 = vunpack.c.h.b16 %v430
    %v779 = vunpack.c.l.b16 %v431
    %v780 = vunpack.c.h.b16 %v431
    %v781 = vunpack.c.l.b16 %v432
    %v782 = vunpack.c.h.b16 %v432
    %v783 = vunpack.c.l.b16 %v433
    %v784 = vunpack.c.h.b16 %v433
    %v785 = vunpack.c.l.b16 %v434
    %v786 = vunpack.c.h.b16 %v434
    %v787 = vunpack.c.l.b16 %v435
    %v788 = vunpack.c.h.b16 %v435
    %v789 = vunpack.c.l.b16 %v436
    %v790 = vunpack.c.h.b16 %v436
    %v791 = vunpack.c.l.b16 %v437
    %v792 = vunpack.c.h.b16 %v437
    %v793 = vunpack.c.l.b16 %v438
    %v794 = vunpack.c.h.b16 %v438
    %v795 = vunpack.c.l.b16 %v439
    %v796 = vunpack.c.h.b16 %v439
    %v797 = vunpack.c.l.b16 %v440
    %v798 = vunpack.c.h.b16 %v440
    %v799 = vunpack.c.l.b16 %v441
    %v800 = vunpack.c.h.b16 %v441
    %v801 = vunpack.c.l.b16 %v442
    %v802 = vunpack.c.h.b16 %v442
    %v803 = vunpack.c.l.b16 %v443
    %v804 = vunpack.c.h.b16 %v443
    %v805 = vunpack.c.l.b16 %v444
    %v806 = vunpack.c.h.b16 %v444
    %v807 = vunpack.c.l.b16 %v445
    %v808 = vunpack.c.h.b16 %v445
    %v809 = vunpack.c.l.b16 %v446
    %v810 = vunpack.c.h.b16 %v446
    %v811 = vunpack.c.l.b16 %v447
    %v812 = vunpack.c.h.b16 %v447
    %v813 = vunpack.c.l.b16 %v448
    %v814 = vunpack.c.h.b16 %v448
    %v815 = vunpack.c.l.b16 %v449
    %v816 = vunpack.c.h.b16 %v449
    %v817 = vunpack.c.l.b16 %v450
    %v818 = vunpack.c.h.b16 %v450
    %v819 = vunpack.c.l.b16 %v451
    %v820 = vunpack.c.h.b16 %v451
    %v821 = vunpack.c.l.b16 %v452
    %v822 = vunpack.c.h.b16 %v452
    %v823 = vunpack.c.l.b16 %v453
    %v824 = vunpack.c.h.b16 %v453
    %v825 = vunpack.c.l.b16 %v454
    %v826 = vunpack.c.h.b16 %v454
    %v827 = vpack.c.b16 %v767, %v763
    %v828 = vpack.c.b16 %v768, %v764
    %v829 = vpack.c.b16 %v769, %v765
    %v830 = vpack.c.b16 %v770, %v766
    %v831 = vpack.c.b16 %v775, %v771
    %v832 = vpack.c.b16 %v776, %v772
    %v833 = vpack.c.b16 %v777, %v773
    %v834 = vpack.c.b16 %v778, %v774
    %v835 = vpack.c.b16 %v783, %v779
    %v836 = vpack.c.b16 %v784, %v780
    %v837 = vpack.c.b16 %v785, %v781
    %v838 = vpack.c.b16 %v786, %v782
    %v839 = vpack.c.b16 %v791, %v787
    %v840 = vpack.c.b16 %v792, %v788
    %v841 = vpack.c.b16 %v793, %v789
    %v842 = vpack.c.b16 %v794, %v790
    %v843 = vpack.c.b16 %v799, %v795
    %v844 = vpack.c.b16 %v800, %v796
    %v845 = vpack.c.b16 %v801, %v797
    %v846 = vpack.c.b16 %v802, %v798
    %v847 = vpack.c.b16 %v807, %v803
    %v848 = vpack.c.b16 %v808, %v804
    %v849 = vpack.c.b16 %v809, %v805
    %v850 = vpack.c.b16 %v810, %v806
    %v851 = vpack.c.b16 %v815, %v811
    %v852 = vpack.c.b16 %v816, %v812
    %v853 = vpack.c.b16 %v817, %v813
    %v854 = vpack.c.b16 %v818, %v814
    %v855 = vpack.c.b16 %v823, %v819
    %v856 = vpack.c.b16 %v824, %v820
    %v857 = vpack.c.b16 %v825, %v821
    %v858 = vpack.c.b16 %v826, %v822
    %891 = vmatprep.subr.bf16.mxu0 %v828
    %892 = vmatpush1.bf16.msra.mxu0 %v827
    %893 = vmatprep.subr.bf16.mxu0 %v832
    %894 = vmatpush1.bf16.msra.mxu0 %v831
    %895 = vmatprep.subr.bf16.mxu0 %v836
    %896 = vmatpush1.bf16.msra.mxu0 %v835
    %897 = vmatprep.subr.bf16.mxu0 %v840
    %898 = vmatpush1.bf16.msra.mxu0 %v839
    %899 = vmatprep.subr.bf16.mxu0 %v844
    %900 = vmatpush1.bf16.msra.mxu0 %v843
    %901 = vmatprep.subr.bf16.mxu0 %v848
    %902 = vmatpush1.bf16.msra.mxu0 %v847
    %903 = vmatprep.subr.bf16.mxu0 %v852
    %904 = vmatpush1.bf16.msra.mxu0 %v851
    %905 = vmatprep.subr.bf16.mxu0 %v856
    %906 = vmatpush1.bf16.msra.mxu0 %v855
    %907 = vmatprep.subr.bf16.mxu0 0
    %908 = vmatpush1.bf16.msra.mxu0 0
    %909 = vmatprep.subr.bf16.mxu0 0
    %910 = vmatpush1.bf16.msra.mxu0 0
    %911 = vmatprep.subr.bf16.mxu0 0
    %912 = vmatpush1.bf16.msra.mxu0 0
    %913 = vmatprep.subr.bf16.mxu0 0
    %914 = vmatpush1.bf16.msra.mxu0 0
    %915 = vmatprep.subr.bf16.mxu0 0
    %916 = vmatpush1.bf16.msra.mxu0 0
    %917 = vmatprep.subr.bf16.mxu0 0
    %918 = vmatpush1.bf16.msra.mxu0 0
    %919 = vmatprep.subr.bf16.mxu0 0
    %920 = vmatpush1.bf16.msra.mxu0 0
    %921 = vmatprep.subr.bf16.mxu0 0
    %922 = vmatpush1.bf16.msra.mxu0 0
    %923 = vmatprep.mubr.bf16.mxu0 0
    %924 = vmatmul.mubr.bf16.gmra.mrb[0].mxu0 %v422
    %v925 = vpop.f32.mrb[0].mxu0
    %v926 = vadd.f32 %v684, %v925
    %v927 = vpop.f32.mrb[0].mxu0
    %v928 = vadd.f32 %v686, %v927
    %v929 = vpop.f32.mrb[0].mxu0
    %v930 = vpop.f32.mrb[0].mxu0
    %931 = vdwg.mxu0
    %932 = vmatprep.subr.bf16.mxu0 %v830
    %933 = vmatpush1.bf16.msra.mxu0 %v829
    %934 = vmatprep.subr.bf16.mxu0 %v834
    %935 = vmatpush1.bf16.msra.mxu0 %v833
    %936 = vmatprep.subr.bf16.mxu0 %v838
    %937 = vmatpush1.bf16.msra.mxu0 %v837
    %938 = vmatprep.subr.bf16.mxu0 %v842
    %939 = vmatpush1.bf16.msra.mxu0 %v841
    %940 = vmatprep.subr.bf16.mxu0 %v846
    %941 = vmatpush1.bf16.msra.mxu0 %v845
    %942 = vmatprep.subr.bf16.mxu0 %v850
    %943 = vmatpush1.bf16.msra.mxu0 %v849
    %944 = vmatprep.subr.bf16.mxu0 %v854
    %945 = vmatpush1.bf16.msra.mxu0 %v853
    %946 = vmatprep.subr.bf16.mxu0 %v858
    %947 = vmatpush1.bf16.msra.mxu0 %v857
    %948 = vmatprep.subr.bf16.mxu0 0
    %949 = vmatpush1.bf16.msra.mxu0 0
    %950 = vmatprep.subr.bf16.mxu0 0
    %951 = vmatpush1.bf16.msra.mxu0 0
    %952 = vmatprep.subr.bf16.mxu0 0
    %953 = vmatpush1.bf16.msra.mxu0 0
    %954 = vmatprep.subr.bf16.mxu0 0
    %955 = vmatpush1.bf16.msra.mxu0 0
    %956 = vmatprep.subr.bf16.mxu0 0
    %957 = vmatpush1.bf16.msra.mxu0 0
    %958 = vmatprep.subr.bf16.mxu0 0
    %959 = vmatpush1.bf16.msra.mxu0 0
    %960 = vmatprep.subr.bf16.mxu0 0
    %961 = vmatpush1.bf16.msra.mxu0 0
    %962 = vmatprep.subr.bf16.mxu0 0
    %963 = vmatpush1.bf16.msra.mxu0 0
    %964 = vmatprep.mubr.bf16.mxu0 0
    %965 = vmatmul.mubr.bf16.gmra.mrb[0].mxu0 %v422
    %v966 = vpop.f32.mrb[0].mxu0
    %v967 = vadd.f32 %v725, %v966
    %v968 = vpop.f32.mrb[0].mxu0
    %v969 = vadd.f32 %v727, %v968
    %v970 = vpop.f32.mrb[0].mxu0
    %v971 = vpop.f32.mrb[0].mxu0
    %972 = vdwg.mxu0
    %s973 = scalar_lea.vmem %s4, 4
    %v974 = vld [vmem:[%s973] sm:$0xf]
    %v976 = vlaneseq
    %v977 = vshrl.u32 %v976, 7
    %v978 = vsub.s32 0, %v977
    %v979 = vrot.slane %v974, %v978
    %v980 = vlaneseq
    %v981 = vshrl.u32 %v980, 7
    %v982 = vsub.s32 1, %v981
    %v983 = vrot.slane %v974, %v982
    %v984 = vlaneseq
    %v985 = vshrl.u32 %v984, 7
    %v986 = vsub.s32 2, %v985
    %v987 = vrot.slane %v974, %v986
    %v988 = vlaneseq
    %v989 = vshrl.u32 %v988, 7
    %v990 = vsub.s32 3, %v989
    %v991 = vrot.slane %v974, %v990
    %v996 = vadd.f32 %v926, %v979
    %v997 = vadd.f32 %v928, %v983
    %v998 = vadd.f32 %v967, %v987
    %v999 = vadd.f32 %v969, %v991
    %v1000 = vxor.u32 %v996, 2147483648
    %v1001 = vmul.f32 %v1000, 1.442695
    %v1002 = vpow.pop %v1001
    %v1003 = vadd.f32 %v1002, 1.0
    %v1004 = vrcp.pop %v1003
    %v1005 = vmul.f32 1.0, %v1004
    %v1006 = vxor.u32 %v997, 2147483648
    %v1007 = vmul.f32 %v1006, 1.442695
    %v1008 = vpow.pop %v1007
    %v1009 = vadd.f32 %v1008, 1.0
    %v1010 = vrcp.pop %v1009
    %v1011 = vmul.f32 1.0, %v1010
    %v1012 = vtanh.pop %v998
    %v1013 = vxor.u32 %v999, 2147483648
    %v1014 = vmul.f32 %v1013, 1.442695
    %v1015 = vpow.pop %v1014
    %v1016 = vadd.f32 %v1015, 1.0
    %v1017 = vrcp.pop %v1016
    %v1018 = vmul.f32 1.0, %v1017
    %v1019 = vmul.f32 %v1011, %v421
    %v1020 = vmul.f32 %v1005, %v1012
    %v1021 = vadd.f32 %v1019, %v1020
    %v1022 = vtanh.pop %v1021
    %v1023 = vmul.f32 %v1018, %v1022
    %s1024 = scalar_lea.vmem [#allocation11], 1
    %1025 = vst [vmem:[%s1024] sm:$0x1] %v1023
    %s1026 = scalar_lea.vmem [#allocation13], 1
    %1027 = vst [vmem:[%s1026] sm:$0x1] %v1021
    %s1028 = scalar_lea.vmem %s5, 2
    %v1029 = vld [vmem:[%s1028] sm:$0x1]
    %s1030 = scalar_lea.vmem %s6, 2
    %v1031 = vld [vmem:[%s1030] sm:$0x1]
    %v1032 = vpack.c.bf16 %v1023, %v1023
    %s1033 = scalar_lea.vmem [#allocation7], 256
    %v1034 = vld [vmem:[%s1033] sm:$0xff]
    %v1035 = vld [vmem:[%s1033 + $0x8] sm:$0xff]
    %v1036 = vld [vmem:[%s1033 + $0x10] sm:$0xff]
    %v1037 = vld [vmem:[%s1033 + $0x18] sm:$0xff]
    %v1038 = vld [vmem:[%s1033 + $0x20] sm:$0xff]
    %v1039 = vld [vmem:[%s1033 + $0x28] sm:$0xff]
    %v1040 = vld [vmem:[%s1033 + $0x30] sm:$0xff]
    %v1041 = vld [vmem:[%s1033 + $0x38] sm:$0xff]
    %v1042 = vld [vmem:[%s1033 + $0x40] sm:$0xff]
    %v1043 = vld [vmem:[%s1033 + $0x48] sm:$0xff]
    %v1044 = vld [vmem:[%s1033 + $0x50] sm:$0xff]
    %v1045 = vld [vmem:[%s1033 + $0x58] sm:$0xff]
    %v1046 = vld [vmem:[%s1033 + $0x60] sm:$0xff]
    %v1047 = vld [vmem:[%s1033 + $0x68] sm:$0xff]
    %v1048 = vld [vmem:[%s1033 + $0x70] sm:$0xff]
    %v1049 = vld [vmem:[%s1033 + $0x78] sm:$0xff]
    %v1050 = vld [vmem:[%s1033 + $0x80] sm:$0xff]
    %v1051 = vld [vmem:[%s1033 + $0x88] sm:$0xff]
    %v1052 = vld [vmem:[%s1033 + $0x90] sm:$0xff]
    %v1053 = vld [vmem:[%s1033 + $0x98] sm:$0xff]
    %v1054 = vld [vmem:[%s1033 + $0xa0] sm:$0xff]
    %v1055 = vld [vmem:[%s1033 + $0xa8] sm:$0xff]
    %v1056 = vld [vmem:[%s1033 + $0xb0] sm:$0xff]
    %v1057 = vld [vmem:[%s1033 + $0xb8] sm:$0xff]
    %v1058 = vld [vmem:[%s1033 + $0xc0] sm:$0xff]
    %v1059 = vld [vmem:[%s1033 + $0xc8] sm:$0xff]
    %v1060 = vld [vmem:[%s1033 + $0xd0] sm:$0xff]
    %v1061 = vld [vmem:[%s1033 + $0xd8] sm:$0xff]
    %v1062 = vld [vmem:[%s1033 + $0xe0] sm:$0xff]
    %v1063 = vld [vmem:[%s1033 + $0xe8] sm:$0xff]
    %v1064 = vld [vmem:[%s1033 + $0xf0] sm:$0xff]
    %v1065 = vld [vmem:[%s1033 + $0xf8] sm:$0xff]
    %v1066 = vpack.c.bf16 %v1029, %v1029
    %s1067 = scalar_lea.vmem [#allocation9], 512
    %v1068 = vld [vmem:[%s1067] sm:$0xff]
    %v1069 = vld [vmem:[%s1067 + $0x8] sm:$0xff]
    %v1070 = vld [vmem:[%s1067 + $0x10] sm:$0xff]
    %v1071 = vld [vmem:[%s1067 + $0x18] sm:$0xff]
    %v1072 = vld [vmem:[%s1067 + $0x20] sm:$0xff]
    %v1073 = vld [vmem:[%s1067 + $0x28] sm:$0xff]
    %v1074 = vld [vmem:[%s1067 + $0x30] sm:$0xff]
    %v1075 = vld [vmem:[%s1067 + $0x38] sm:$0xff]
    %v1076 = vld [vmem:[%s1067 + $0x40] sm:$0xff]
    %v1077 = vld [vmem:[%s1067 + $0x48] sm:$0xff]
    %v1078 = vld [vmem:[%s1067 + $0x50] sm:$0xff]
    %v1079 = vld [vmem:[%s1067 + $0x58] sm:$0xff]
    %v1080 = vld [vmem:[%s1067 + $0x60] sm:$0xff]
    %v1081 = vld [vmem:[%s1067 + $0x68] sm:$0xff]
    %v1082 = vld [vmem:[%s1067 + $0x70] sm:$0xff]
    %v1083 = vld [vmem:[%s1067 + $0x78] sm:$0xff]
    %v1084 = vld [vmem:[%s1067 + $0x80] sm:$0xff]
    %v1085 = vld [vmem:[%s1067 + $0x88] sm:$0xff]
    %v1086 = vld [vmem:[%s1067 + $0x90] sm:$0xff]
    %v1087 = vld [vmem:[%s1067 + $0x98] sm:$0xff]
    %v1088 = vld [vmem:[%s1067 + $0xa0] sm:$0xff]
    %v1089 = vld [vmem:[%s1067 + $0xa8] sm:$0xff]
    %v1090 = vld [vmem:[%s1067 + $0xb0] sm:$0xff]
    %v1091 = vld [vmem:[%s1067 + $0xb8] sm:$0xff]
    %v1092 = vld [vmem:[%s1067 + $0xc0] sm:$0xff]
    %v1093 = vld [vmem:[%s1067 + $0xc8] sm:$0xff]
    %v1094 = vld [vmem:[%s1067 + $0xd0] sm:$0xff]
    %v1095 = vld [vmem:[%s1067 + $0xd8] sm:$0xff]
    %v1096 = vld [vmem:[%s1067 + $0xe0] sm:$0xff]
    %v1097 = vld [vmem:[%s1067 + $0xe8] sm:$0xff]
    %v1098 = vld [vmem:[%s1067 + $0xf0] sm:$0xff]
    %v1099 = vld [vmem:[%s1067 + $0xf8] sm:$0xff]
    %v1132 = vunpack.c.l.b16 %v1068
    %v1133 = vunpack.c.h.b16 %v1068
    %v1134 = vunpack.c.l.b16 %v1069
    %v1135 = vunpack.c.h.b16 %v1069
    %v1136 = vunpack.c.l.b16 %v1070
    %v1137 = vunpack.c.h.b16 %v1070
    %v1138 = vunpack.c.l.b16 %v1071
    %v1139 = vunpack.c.h.b16 %v1071
    %v1140 = vunpack.c.l.b16 %v1072
    %v1141 = vunpack.c.h.b16 %v1072
    %v1142 = vunpack.c.l.b16 %v1073
    %v1143 = vunpack.c.h.b16 %v1073
    %v1144 = vunpack.c.l.b16 %v1074
    %v1145 = vunpack.c.h.b16 %v1074
    %v1146 = vunpack.c.l.b16 %v1075
    %v1147 = vunpack.c.h.b16 %v1075
    %v1148 = vunpack.c.l.b16 %v1076
    %v1149 = vunpack.c.h.b16 %v1076
    %v1150 = vunpack.c.l.b16 %v1077
    %v1151 = vunpack.c.h.b16 %v1077
    %v1152 = vunpack.c.l.b16 %v1078
    %v1153 = vunpack.c.h.b16 %v1078
    %v1154 = vunpack.c.l.b16 %v1079
    %v1155 = vunpack.c.h.b16 %v1079
    %v1156 = vunpack.c.l.b16 %v1080
    %v1157 = vunpack.c.h.b16 %v1080
    %v1158 = vunpack.c.l.b16 %v1081
    %v1159 = vunpack.c.h.b16 %v1081
    %v1160 = vunpack.c.l.b16 %v1082
    %v1161 = vunpack.c.h.b16 %v1082
    %v1162 = vunpack.c.l.b16 %v1083
    %v1163 = vunpack.c.h.b16 %v1083
    %v1164 = vunpack.c.l.b16 %v1084
    %v1165 = vunpack.c.h.b16 %v1084
    %v1166 = vunpack.c.l.b16 %v1085
    %v1167 = vunpack.c.h.b16 %v1085
    %v1168 = vunpack.c.l.b16 %v1086
    %v1169 = vunpack.c.h.b16 %v1086
    %v1170 = vunpack.c.l.b16 %v1087
    %v1171 = vunpack.c.h.b16 %v1087
    %v1172 = vunpack.c.l.b16 %v1088
    %v1173 = vunpack.c.h.b16 %v1088
    %v1174 = vunpack.c.l.b16 %v1089
    %v1175 = vunpack.c.h.b16 %v1089
    %v1176 = vunpack.c.l.b16 %v1090
    %v1177 = vunpack.c.h.b16 %v1090
    %v1178 = vunpack.c.l.b16 %v1091
    %v1179 = vunpack.c.h.b16 %v1091
    %v1180 = vunpack.c.l.b16 %v1092
    %v1181 = vunpack.c.h.b16 %v1092
    %v1182 = vunpack.c.l.b16 %v1093
    %v1183 = vunpack.c.h.b16 %v1093
    %v1184 = vunpack.c.l.b16 %v1094
    %v1185 = vunpack.c.h.b16 %v1094
    %v1186 = vunpack.c.l.b16 %v1095
    %v1187 = vunpack.c.h.b16 %v1095
    %v1188 = vunpack.c.l.b16 %v1096
    %v1189 = vunpack.c.h.b16 %v1096
    %v1190 = vunpack.c.l.b16 %v1097
    %v1191 = vunpack.c.h.b16 %v1097
    %v1192 = vunpack.c.l.b16 %v1098
    %v1193 = vunpack.c.h.b16 %v1098
    %v1194 = vunpack.c.l.b16 %v1099
    %v1195 = vunpack.c.h.b16 %v1099
    %v1196 = vpack.c.b16 %v1136, %v1132
    %v1197 = vpack.c.b16 %v1137, %v1133
    %v1198 = vpack.c.b16 %v1138, %v1134
    %v1199 = vpack.c.b16 %v1139, %v1135
    %v1200 = vpack.c.b16 %v1144, %v1140
    %v1201 = vpack.c.b16 %v1145, %v1141
    %v1202 = vpack.c.b16 %v1146, %v1142
    %v1203 = vpack.c.b16 %v1147, %v1143
    %v1204 = vpack.c.b16 %v1152, %v1148
    %v1205 = vpack.c.b16 %v1153, %v1149
    %v1206 = vpack.c.b16 %v1154, %v1150
    %v1207 = vpack.c.b16 %v1155, %v1151
    %v1208 = vpack.c.b16 %v1160, %v1156
    %v1209 = vpack.c.b16 %v1161, %v1157
    %v1210 = vpack.c.b16 %v1162, %v1158
    %v1211 = vpack.c.b16 %v1163, %v1159
    %v1212 = vpack.c.b16 %v1168, %v1164
    %v1213 = vpack.c.b16 %v1169, %v1165
    %v1214 = vpack.c.b16 %v1170, %v1166
    %v1215 = vpack.c.b16 %v1171, %v1167
    %v1216 = vpack.c.b16 %v1176, %v1172
    %v1217 = vpack.c.b16 %v1177, %v1173
    %v1218 = vpack.c.b16 %v1178, %v1174
    %v1219 = vpack.c.b16 %v1179, %v1175
    %v1220 = vpack.c.b16 %v1184, %v1180
    %v1221 = vpack.c.b16 %v1185, %v1181
    %v1222 = vpack.c.b16 %v1186, %v1182
    %v1223 = vpack.c.b16 %v1187, %v1183
    %v1224 = vpack.c.b16 %v1192, %v1188
    %v1225 = vpack.c.b16 %v1193, %v1189
    %v1226 = vpack.c.b16 %v1194, %v1190
    %v1227 = vpack.c.b16 %v1195, %v1191
    %1260 = vmatprep.subr.bf16.mxu0 %v1197
    %1261 = vmatpush1.bf16.msra.mxu0 %v1196
    %1262 = vmatprep.subr.bf16.mxu0 %v1201
    %1263 = vmatpush1.bf16.msra.mxu0 %v1200
    %1264 = vmatprep.subr.bf16.mxu0 %v1205
    %1265 = vmatpush1.bf16.msra.mxu0 %v1204
    %1266 = vmatprep.subr.bf16.mxu0 %v1209
    %1267 = vmatpush1.bf16.msra.mxu0 %v1208
    %1268 = vmatprep.subr.bf16.mxu0 %v1213
    %1269 = vmatpush1.bf16.msra.mxu0 %v1212
    %1270 = vmatprep.subr.bf16.mxu0 %v1217
    %1271 = vmatpush1.bf16.msra.mxu0 %v1216
    %1272 = vmatprep.subr.bf16.mxu0 %v1221
    %1273 = vmatpush1.bf16.msra.mxu0 %v1220
    %1274 = vmatprep.subr.bf16.mxu0 %v1225
    %1275 = vmatpush1.bf16.msra.mxu0 %v1224
    %1276 = vmatprep.subr.bf16.mxu0 0
    %1277 = vmatpush1.bf16.msra.mxu0 0
    %1278 = vmatprep.subr.bf16.mxu0 0
    %1279 = vmatpush1.bf16.msra.mxu0 0
    %1280 = vmatprep.subr.bf16.mxu0 0
    %1281 = vmatpush1.bf16.msra.mxu0 0
    %1282 = vmatprep.subr.bf16.mxu0 0
    %1283 = vmatpush1.bf16.msra.mxu0 0
    %1284 = vmatprep.subr.bf16.mxu0 0
    %1285 = vmatpush1.bf16.msra.mxu0 0
    %1286 = vmatprep.subr.bf16.mxu0 0
    %1287 = vmatpush1.bf16.msra.mxu0 0
    %1288 = vmatprep.subr.bf16.mxu0 0
    %1289 = vmatpush1.bf16.msra.mxu0 0
    %1290 = vmatprep.subr.bf16.mxu0 0
    %1291 = vmatpush1.bf16.msra.mxu0 0
    %1292 = vmatprep.mubr.bf16.mxu0 0
    %1293 = vmatmul.mubr.bf16.gmra.mrb[0].mxu0 %v1066
    %v1294 = vpop.f32.mrb[0].mxu0
    %v1295 = vadd.f32 0.0, %v1294
    %v1296 = vpop.f32.mrb[0].mxu0
    %v1297 = vadd.f32 0.0, %v1296
    %v1298 = vpop.f32.mrb[0].mxu0
    %v1299 = vpop.f32.mrb[0].mxu0
    %1300 = vdwg.mxu0
    %1301 = vmatprep.subr.bf16.mxu0 %v1199
    %1302 = vmatpush1.bf16.msra.mxu0 %v1198
    %1303 = vmatprep.subr.bf16.mxu0 %v1203
    %1304 = vmatpush1.bf16.msra.mxu0 %v1202
    %1305 = vmatprep.subr.bf16.mxu0 %v1207
    %1306 = vmatpush1.bf16.msra.mxu0 %v1206
    %1307 = vmatprep.subr.bf16.mxu0 %v1211
    %1308 = vmatpush1.bf16.msra.mxu0 %v1210
    %1309 = vmatprep.subr.bf16.mxu0 %v1215
    %1310 = vmatpush1.bf16.msra.mxu0 %v1214
    %1311 = vmatprep.subr.bf16.mxu0 %v1219
    %1312 = vmatpush1.bf16.msra.mxu0 %v1218
    %1313 = vmatprep.subr.bf16.mxu0 %v1223
    %1314 = vmatpush1.bf16.msra.mxu0 %v1222
    %1315 = vmatprep.subr.bf16.mxu0 %v1227
    %1316 = vmatpush1.bf16.msra.mxu0 %v1226
    %1317 = vmatprep.subr.bf16.mxu0 0
    %1318 = vmatpush1.bf16.msra.mxu0 0
    %1319 = vmatprep.subr.bf16.mxu0 0
    %1320 = vmatpush1.bf16.msra.mxu0 0
    %1321 = vmatprep.subr.bf16.mxu0 0
    %1322 = vmatpush1.bf16.msra.mxu0 0
    %1323 = vmatprep.subr.bf16.mxu0 0
    %1324 = vmatpush1.bf16.msra.mxu0 0
    %1325 = vmatprep.subr.bf16.mxu0 0
    %1326 = vmatpush1.bf16.msra.mxu0 0
    %1327 = vmatprep.subr.bf16.mxu0 0
    %1328 = vmatpush1.bf16.msra.mxu0 0
    %1329 = vmatprep.subr.bf16.mxu0 0
    %1330 = vmatpush1.bf16.msra.mxu0 0
    %1331 = vmatprep.subr.bf16.mxu0 0
    %1332 = vmatpush1.bf16.msra.mxu0 0
    %1333 = vmatprep.mubr.bf16.mxu0 0
    %1334 = vmatmul.mubr.bf16.gmra.mrb[0].mxu0 %v1066
    %v1335 = vpop.f32.mrb[0].mxu0
    %v1336 = vadd.f32 0.0, %v1335
    %v1337 = vpop.f32.mrb[0].mxu0
    %v1338 = vadd.f32 0.0, %v1337
    %v1339 = vpop.f32.mrb[0].mxu0
    %v1340 = vpop.f32.mrb[0].mxu0
    %1341 = vdwg.mxu0
    %v1374 = vunpack.c.l.b16 %v1034
    %v1375 = vunpack.c.h.b16 %v1034
    %v1376 = vunpack.c.l.b16 %v1035
    %v1377 = vunpack.c.h.b16 %v1035
    %v1378 = vunpack.c.l.b16 %v1036
    %v1379 = vunpack.c.h.b16 %v1036
    %v1380 = vunpack.c.l.b16 %v1037
    %v1381 = vunpack.c.h.b16 %v1037
    %v1382 = vunpack.c.l.b16 %v1038
    %v1383 = vunpack.c.h.b16 %v1038
    %v1384 = vunpack.c.l.b16 %v1039
    %v1385 = vunpack.c.h.b16 %v1039
    %v1386 = vunpack.c.l.b16 %v1040
    %v1387 = vunpack.c.h.b16 %v1040
    %v1388 = vunpack.c.l.b16 %v1041
    %v1389 = vunpack.c.h.b16 %v1041
    %v1390 = vunpack.c.l.b16 %v1042
    %v1391 = vunpack.c.h.b16 %v1042
    %v1392 = vunpack.c.l.b16 %v1043
    %v1393 = vunpack.c.h.b16 %v1043
    %v1394 = vunpack.c.l.b16 %v1044
    %v1395 = vunpack.c.h.b16 %v1044
    %v1396 = vunpack.c.l.b16 %v1045
    %v1397 = vunpack.c.h.b16 %v1045
    %v1398 = vunpack.c.l.b16 %v1046
    %v1399 = vunpack.c.h.b16 %v1046
    %v1400 = vunpack.c.l.b16 %v1047
    %v1401 = vunpack.c.h.b16 %v1047
    %v1402 = vunpack.c.l.b16 %v1048
    %v1403 = vunpack.c.h.b16 %v1048
    %v1404 = vunpack.c.l.b16 %v1049
    %v1405 = vunpack.c.h.b16 %v1049
    %v1406 = vunpack.c.l.b16 %v1050
    %v1407 = vunpack.c.h.b16 %v1050
    %v1408 = vunpack.c.l.b16 %v1051
    %v1409 = vunpack.c.h.b16 %v1051
    %v1410 = vunpack.c.l.b16 %v1052
    %v1411 = vunpack.c.h.b16 %v1052
    %v1412 = vunpack.c.l.b16 %v1053
    %v1413 = vunpack.c.h.b16 %v1053
    %v1414 = vunpack.c.l.b16 %v1054
    %v1415 = vunpack.c.h.b16 %v1054
    %v1416 = vunpack.c.l.b16 %v1055
    %v1417 = vunpack.c.h.b16 %v1055
    %v1418 = vunpack.c.l.b16 %v1056
    %v1419 = vunpack.c.h.b16 %v1056
    %v1420 = vunpack.c.l.b16 %v1057
    %v1421 = vunpack.c.h.b16 %v1057
    %v1422 = vunpack.c.l.b16 %v1058
    %v1423 = vunpack.c.h.b16 %v1058
    %v1424 = vunpack.c.l.b16 %v1059
    %v1425 = vunpack.c.h.b16 %v1059
    %v1426 = vunpack.c.l.b16 %v1060
    %v1427 = vunpack.c.h.b16 %v1060
    %v1428 = vunpack.c.l.b16 %v1061
    %v1429 = vunpack.c.h.b16 %v1061
    %v1430 = vunpack.c.l.b16 %v1062
    %v1431 = vunpack.c.h.b16 %v1062
    %v1432 = vunpack.c.l.b16 %v1063
    %v1433 = vunpack.c.h.b16 %v1063
    %v1434 = vunpack.c.l.b16 %v1064
    %v1435 = vunpack.c.h.b16 %v1064
    %v1436 = vunpack.c.l.b16 %v1065
    %v1437 = vunpack.c.h.b16 %v1065
    %v1438 = vpack.c.b16 %v1378, %v1374
    %v1439 = vpack.c.b16 %v1379, %v1375
    %v1440 = vpack.c.b16 %v1380, %v1376
    %v1441 = vpack.c.b16 %v1381, %v1377
    %v1442 = vpack.c.b16 %v1386, %v1382
    %v1443 = vpack.c.b16 %v1387, %v1383
    %v1444 = vpack.c.b16 %v1388, %v1384
    %v1445 = vpack.c.b16 %v1389, %v1385
    %v1446 = vpack.c.b16 %v1394, %v1390
    %v1447 = vpack.c.b16 %v1395, %v1391
    %v1448 = vpack.c.b16 %v1396, %v1392
    %v1449 = vpack.c.b16 %v1397, %v1393
    %v1450 = vpack.c.b16 %v1402, %v1398
    %v1451 = vpack.c.b16 %v1403, %v1399
    %v1452 = vpack.c.b16 %v1404, %v1400
    %v1453 = vpack.c.b16 %v1405, %v1401
    %v1454 = vpack.c.b16 %v1410, %v1406
    %v1455 = vpack.c.b16 %v1411, %v1407
    %v1456 = vpack.c.b16 %v1412, %v1408
    %v1457 = vpack.c.b16 %v1413, %v1409
    %v1458 = vpack.c.b16 %v1418, %v1414
    %v1459 = vpack.c.b16 %v1419, %v1415
    %v1460 = vpack.c.b16 %v1420, %v1416
    %v1461 = vpack.c.b16 %v1421, %v1417
    %v1462 = vpack.c.b16 %v1426, %v1422
    %v1463 = vpack.c.b16 %v1427, %v1423
    %v1464 = vpack.c.b16 %v1428, %v1424
    %v1465 = vpack.c.b16 %v1429, %v1425
    %v1466 = vpack.c.b16 %v1434, %v1430
    %v1467 = vpack.c.b16 %v1435, %v1431
    %v1468 = vpack.c.b16 %v1436, %v1432
    %v1469 = vpack.c.b16 %v1437, %v1433
    %1502 = vmatprep.subr.bf16.mxu0 %v1439
    %1503 = vmatpush1.bf16.msra.mxu0 %v1438
    %1504 = vmatprep.subr.bf16.mxu0 %v1443
    %1505 = vmatpush1.bf16.msra.mxu0 %v1442
    %1506 = vmatprep.subr.bf16.mxu0 %v1447
    %1507 = vmatpush1.bf16.msra.mxu0 %v1446
    %1508 = vmatprep.subr.bf16.mxu0 %v1451
    %1509 = vmatpush1.bf16.msra.mxu0 %v1450
    %1510 = vmatprep.subr.bf16.mxu0 %v1455
    %1511 = vmatpush1.bf16.msra.mxu0 %v1454
    %1512 = vmatprep.subr.bf16.mxu0 %v1459
    %1513 = vmatpush1.bf16.msra.mxu0 %v1458
    %1514 = vmatprep.subr.bf16.mxu0 %v1463
    %1515 = vmatpush1.bf16.msra.mxu0 %v1462
    %1516 = vmatprep.subr.bf16.mxu0 %v1467
    %1517 = vmatpush1.bf16.msra.mxu0 %v1466
    %1518 = vmatprep.subr.bf16.mxu0 0
    %1519 = vmatpush1.bf16.msra.mxu0 0
    %1520 = vmatprep.subr.bf16.mxu0 0
    %1521 = vmatpush1.bf16.msra.mxu0 0
    %1522 = vmatprep.subr.bf16.mxu0 0
    %1523 = vmatpush1.bf16.msra.mxu0 0
    %1524 = vmatprep.subr.bf16.mxu0 0
    %1525 = vmatpush1.bf16.msra.mxu0 0
    %1526 = vmatprep.subr.bf16.mxu0 0
    %1527 = vmatpush1.bf16.msra.mxu0 0
    %1528 = vmatprep.subr.bf16.mxu0 0
    %1529 = vmatpush1.bf16.msra.mxu0 0
    %1530 = vmatprep.subr.bf16.mxu0 0
    %1531 = vmatpush1.bf16.msra.mxu0 0
    %1532 = vmatprep.subr.bf16.mxu0 0
    %1533 = vmatpush1.bf16.msra.mxu0 0
    %1534 = vmatprep.mubr.bf16.mxu0 0
    %1535 = vmatmul.mubr.bf16.gmra.mrb[0].mxu0 %v1032
    %v1536 = vpop.f32.mrb[0].mxu0
    %v1537 = vadd.f32 %v1295, %v1536
    %v1538 = vpop.f32.mrb[0].mxu0
    %v1539 = vadd.f32 %v1297, %v1538
    %v1540 = vpop.f32.mrb[0].mxu0
    %v1541 = vpop.f32.mrb[0].mxu0
    %1542 = vdwg.mxu0
    %1543 = vmatprep.subr.bf16.mxu0 %v1441
    %1544 = vmatpush1.bf16.msra.mxu0 %v1440
    %1545 = vmatprep.subr.bf16.mxu0 %v1445
    %1546 = vmatpush1.bf16.msra.mxu0 %v1444
    %1547 = vmatprep.subr.bf16.mxu0 %v1449
    %1548 = vmatpush1.bf16.msra.mxu0 %v1448
    %1549 = vmatprep.subr.bf16.mxu0 %v1453
    %1550 = vmatpush1.bf16.msra.mxu0 %v1452
    %1551 = vmatprep.subr.bf16.mxu0 %v1457
    %1552 = vmatpush1.bf16.msra.mxu0 %v1456
    %1553 = vmatprep.subr.bf16.mxu0 %v1461
    %1554 = vmatpush1.bf16.msra.mxu0 %v1460
    %1555 = vmatprep.subr.bf16.mxu0 %v1465
    %1556 = vmatpush1.bf16.msra.mxu0 %v1464
    %1557 = vmatprep.subr.bf16.mxu0 %v1469
    %1558 = vmatpush1.bf16.msra.mxu0 %v1468
    %1559 = vmatprep.subr.bf16.mxu0 0
    %1560 = vmatpush1.bf16.msra.mxu0 0
    %1561 = vmatprep.subr.bf16.mxu0 0
    %1562 = vmatpush1.bf16.msra.mxu0 0
    %1563 = vmatprep.subr.bf16.mxu0 0
    %1564 = vmatpush1.bf16.msra.mxu0 0
    %1565 = vmatprep.subr.bf16.mxu0 0
    %1566 = vmatpush1.bf16.msra.mxu0 0
    %1567 = vmatprep.subr.bf16.mxu0 0
    %1568 = vmatpush1.bf16.msra.mxu0 0
    %1569 = vmatprep.subr.bf16.mxu0 0
    %1570 = vmatpush1.bf16.msra.mxu0 0
    %1571 = vmatprep.subr.bf16.mxu0 0
    %1572 = vmatpush1.bf16.msra.mxu0 0
    %1573 = vmatprep.subr.bf16.mxu0 0
    %1574 = vmatpush1.bf16.msra.mxu0 0
    %1575 = vmatprep.mubr.bf16.mxu0 0
    %1576 = vmatmul.mubr.bf16.gmra.mrb[0].mxu0 %v1032
    %v1577 = vpop.f32.mrb[0].mxu0
    %v1578 = vadd.f32 %v1336, %v1577
    %v1579 = vpop.f32.mrb[0].mxu0
    %v1580 = vadd.f32 %v1338, %v1579
    %v1581 = vpop.f32.mrb[0].mxu0
    %v1582 = vpop.f32.mrb[0].mxu0
    %1583 = vdwg.mxu0
    %s1584 = scalar_lea.vmem %s4, 8
    %v1585 = vld [vmem:[%s1584] sm:$0xf]
    %v1587 = vlaneseq
    %v1588 = vshrl.u32 %v1587, 7
    %v1589 = vsub.s32 0, %v1588
    %v1590 = vrot.slane %v1585, %v1589
    %v1591 = vlaneseq
    %v1592 = vshrl.u32 %v1591, 7
    %v1593 = vsub.s32 1, %v1592
    %v1594 = vrot.slane %v1585, %v1593
    %v1595 = vlaneseq
    %v1596 = vshrl.u32 %v1595, 7
    %v1597 = vsub.s32 2, %v1596
    %v1598 = vrot.slane %v1585, %v1597
    %v1599 = vlaneseq
    %v1600 = vshrl.u32 %v1599, 7
    %v1601 = vsub.s32 3, %v1600
    %v1602 = vrot.slane %v1585, %v1601
    %v1607 = vadd.f32 %v1537, %v1590
    %v1608 = vadd.f32 %v1539, %v1594
    %v1609 = vadd.f32 %v1578, %v1598
    %v1610 = vadd.f32 %v1580, %v1602
    %v1611 = vxor.u32 %v1607, 2147483648
    %v1612 = vmul.f32 %v1611, 1.442695
    %v1613 = vpow.pop %v1612
    %v1614 = vadd.f32 %v1613, 1.0
    %v1615 = vrcp.pop %v1614
    %v1616 = vmul.f32 1.0, %v1615
    %v1617 = vxor.u32 %v1608, 2147483648
    %v1618 = vmul.f32 %v1617, 1.442695
    %v1619 = vpow.pop %v1618
    %v1620 = vadd.f32 %v1619, 1.0
    %v1621 = vrcp.pop %v1620
    %v1622 = vmul.f32 1.0, %v1621
    %v1623 = vtanh.pop %v1609
    %v1624 = vxor.u32 %v1610, 2147483648
    %v1625 = vmul.f32 %v1624, 1.442695
    %v1626 = vpow.pop %v1625
    %v1627 = vadd.f32 %v1626, 1.0
    %v1628 = vrcp.pop %v1627
    %v1629 = vmul.f32 1.0, %v1628
    %v1630 = vmul.f32 %v1622, %v1031
    %v1631 = vmul.f32 %v1616, %v1623
    %v1632 = vadd.f32 %v1630, %v1631
    %v1633 = vtanh.pop %v1632
    %v1634 = vmul.f32 %v1629, %v1633
    %s1635 = scalar_lea.vmem [#allocation11], 2
    %1636 = vst [vmem:[%s1635] sm:$0x1] %v1634
    %s1637 = scalar_lea.vmem [#allocation13], 2
    %1638 = vst [vmem:[%s1637] sm:$0x1] %v1632
    %1639 = vst [vmem:[#allocation10] sm:$0x1] %v1634
    // Predicated region
    $region38: #{lstm_pro_encoder_forward.1} parent=1 // pred_check
      _
    $region39: #{lstm_pro_encoder_forward.1} parent=1 // pred_check_branch
      %1641 = sbr.rel (0) target = $region41
    $region40: #{lstm_pro_encoder_forward.1} parent=1 // pred_region
      %s1643 = ssub.s32 16, 16
      %1644 = vsyncadd [#allocation6], %s1643
      %s1646 = sshll.u32 [#allocation10], 4
      %s1647 = int_to_ptr.vmem [resolvable:$true] %s1646
      %1649 = dma.vmem_to_hbm [thread:$0]  %s1647, 16, %s7, [#allocation6]
    $region41: #{lstm_pro_encoder_forward.1} parent=1 // pred_fallthru
      _
    // Predicated region
    $region42: #{lstm_pro_encoder_forward.1} parent=1 // pred_check
      _
    $region43: #{lstm_pro_encoder_forward.1} parent=1 // pred_check_branch
      %1651 = sbr.rel (0) target = $region45
    $region44: #{lstm_pro_encoder_forward.1} parent=1 // pred_region
      %s1653 = ssub.s32 48, 48
      %1654 = vsyncadd [#allocation12], %s1653
      %s1655 = sshll.u32 [#allocation11], 4
      %s1656 = int_to_ptr.vmem [resolvable:$true] %s1655
      %1661 = dma.vmem_to_hbm [thread:$0]  %s1656, 48, %s8, [#allocation12], 16, 16, 1
    $region45: #{lstm_pro_encoder_forward.1} parent=1 // pred_fallthru
      _
    // Predicated region
    $region46: #{lstm_pro_encoder_forward.1} parent=1 // pred_check
      _
    $region47: #{lstm_pro_encoder_forward.1} parent=1 // pred_check_branch
      %1663 = sbr.rel (0) target = $region49
    $region48: #{lstm_pro_encoder_forward.1} parent=1 // pred_region
      %s1665 = ssub.s32 48, 48
      %1666 = vsyncadd [#allocation12], %s1665
      %s1667 = sshll.u32 [#allocation13], 4
      %s1668 = int_to_ptr.vmem [resolvable:$true] %s1667
      %1673 = dma.vmem_to_hbm [thread:$0]  %s1668, 48, %s9, [#allocation12], 16, 16, 1
    $region49: #{lstm_pro_encoder_forward.1} parent=1 // pred_fallthru
      _
    // Predicated region
    $region50: #{lstm_pro_encoder_forward.1} parent=1 // pred_check
      _
    $region51: #{lstm_pro_encoder_forward.1} parent=1 // pred_check_branch
      %1675 = sbr.rel (0) target = $region53
    $region52: #{lstm_pro_encoder_forward.1} parent=1 // pred_region
      %1676 = dma.done [#allocation6], 16
    $region53: #{lstm_pro_encoder_forward.1} parent=1 // pred_fallthru
      _
    // Predicated region
    $region54: #{lstm_pro_encoder_forward.1} parent=1 // pred_check
      _
    $region55: #{lstm_pro_encoder_forward.1} parent=1 // pred_check_branch
      %1678 = sbr.rel (0) target = $region57
    $region56: #{lstm_pro_encoder_forward.1} parent=1 // pred_region
      %1679 = dma.done [#allocation12], 48
    $region57: #{lstm_pro_encoder_forward.1} parent=1 // pred_fallthru
      _
    // Predicated region
    $region58: #{lstm_pro_encoder_forward.1} parent=1 // pred_check
      _
    $region59: #{lstm_pro_encoder_forward.1} parent=1 // pred_check_branch
      %1681 = sbr.rel (0) target = $region61
    $region60: #{lstm_pro_encoder_forward.1} parent=1 // pred_region
      %1682 = dma.done [#allocation12], 48
    $region61: #{lstm_pro_encoder_forward.1} parent=1 // pred_fallthru
      _
    %1683 = vsyncpa [#allocation5], 1
    %1684 = vsyncpa [#allocation8], 1
    %1685 = vsyncpa [#allocation6], 1
    %1686 = vsyncpa [#allocation12], 1

</llo_original>
